<compile_context>
chip_gen: v6e
topology: v6e:2x2x1
jax: 0.10.0
libtpu: 0.0.40
codegen_flags: <defaults>
</compile_context>

<pallas_src>
import functools
import math

import jax
import jax.numpy as jnp
from jax import lax
from jax.experimental import pallas as pl
from jax.experimental.pallas import tpu as pltpu


def _layer_norm(x, w, b, eps=1e-5):
    mu = jnp.mean(x, axis=-1, keepdims=True)
    xc = x - mu
    var = jnp.mean(xc * xc, axis=-1, keepdims=True)
    return xc * lax.rsqrt(var + eps) * w + b


def encoder_kernel(valid_ref,                       # scalar-prefetch: (B,) int32 in SMEM
                   x_ref,
                   wqkv_ref, bqkv_ref, wo_ref, bo_ref, ln1w_ref, ln1b_ref,
                   w1_ref, b1_ref, w2_ref, b2_ref, ln2w_ref, ln2b_ref,
                   out_ref,
                   *, num_heads, dim_head, seq_len, block_b, compute_dtype):
    S, H, dh = seq_len, num_heads, dim_head
    Hd = H * dh
    M = block_b * S
    cdt = compute_dtype
    g = pl.program_id(0)

    x = x_ref[...]                                   # (M, D) f32
    D = x.shape[-1]

    # Fused QKV projection: one matmul with N = 3*H*dh (scale already folded
    # into the q columns / q bias by the wrapper), f32 accumulation.
    qkv = jnp.dot(x.astype(cdt), wqkv_ref[...],
                  preferred_element_type=jnp.float32) + bqkv_ref[...]
    # Split the row axis (major, tile-aligned since S % 8 == 0 at f32) into
    # (block_b, S), then cast matmul operands to the compute dtype once.
    qkv = qkv.reshape(block_b, S, 3 * Hd).astype(cdt)

    # Padding mask from scalar-prefetched valid lengths: key positions
    # >= valid_len[b] are masked (exact masked_fill(-1e9) semantics).
    col = lax.broadcasted_iota(jnp.int32, (block_b, 1, S), 2)
    row = lax.broadcasted_iota(jnp.int32, (block_b, 1, S), 0)
    vl = jnp.zeros((block_b, 1, S), jnp.int32)
    for b in range(block_b):                         # tiny static select chain
        vl = jnp.where(row == b, valid_ref[g * block_b + b], vl)
    pad = col >= vl                                  # (block_b, 1, S) bool

    # Multi-head attention: static loop over heads, fully batched over the
    # block's batch rows.  Only one head's (block_b, S, S) scores are live at a
    # time, and the head concat is replaced by accumulating each head's slice
    # of the output projection (concat(heads) @ Wo == sum_h ctx_h @ Wo_rows_h).
    attn_acc = jnp.zeros((M, D), jnp.float32)
    for h in range(H):
        q_h = qkv[:, :, h * dh:(h + 1) * dh]                     # (block_b,S,dh)
        k_h = qkv[:, :, Hd + h * dh:Hd + (h + 1) * dh]
        v_h = qkv[:, :, 2 * Hd + h * dh:2 * Hd + (h + 1) * dh]

        s = jnp.einsum('bqd,bkd->bqk', q_h, k_h,
                       preferred_element_type=jnp.float32)       # (block_b,S,S) f32
        s = jnp.where(pad, jnp.float32(-1e9), s)

        m = jnp.max(s, axis=-1, keepdims=True)
        e = jnp.exp(s - m)
        p = e * pl.reciprocal(jnp.sum(e, axis=-1, keepdims=True), approx=True)

        ctx = jnp.einsum('bqk,bkd->bqd', p.astype(cdt), v_h,
                         preferred_element_type=jnp.float32)     # (block_b,S,dh)
        attn_acc = attn_acc + jnp.dot(ctx.reshape(M, dh).astype(cdt),
                                      wo_ref[h * dh:(h + 1) * dh, :],
                                      preferred_element_type=jnp.float32)

    attn = _layer_norm(attn_acc + bo_ref[...], ln1w_ref[...], ln1b_ref[...])

    # Feed-forward: Linear -> Dropout(identity) -> GELU(tanh approx) -> Linear -> Dropout.
    h1 = jnp.dot(attn.astype(cdt), w1_ref[...],
                 preferred_element_type=jnp.float32) + b1_ref[...]
    h1 = 0.5 * h1 * (1.0 + jnp.tanh(0.7978845608028654 *
                                    (h1 + 0.044715 * h1 * h1 * h1)))   # f32, EUP tanh
    h2 = jnp.dot(h1.astype(cdt), w2_ref[...],
                 preferred_element_type=jnp.float32) + b2_ref[...]

    out_ref[...] = _layer_norm(h2, ln2w_ref[...], ln2b_ref[...]).astype(out_ref.dtype)


def encoder_forward(x, valid_len, params, num_heads, dim_head, *,
                    block_b=None, matmul_dtype=jnp.bfloat16,
                    vmem_limit_bytes=32 * 1024 * 1024):
    """x: (B, S, D) f32; valid_len: (B,) int — key positions >= valid_len are masked."""
    B, S, D = x.shape
    if block_b is None:
        # >= 2 grid steps whenever B >= 2 so both v7x TensorCores get work; on
        # v5e/v6e (1 TC, 128 MiB VMEM) pass block_b=B and a larger vmem limit.
        block_b = max(1, B // 2)
    assert B % block_b == 0, "block_b must divide batch"
    assert (block_b * S) % 8 == 0 or block_b == B, "block rows must be sublane aligned"
    cdt = jnp.dtype(matmul_dtype)

    # PyTorch quirk: scale = query.size(1) ** 0.5 == sqrt(seq_len), NOT sqrt(dim_head).
    # Fold 1/scale into the fused q columns / q bias (exact, zero kernel cost).
    inv_scale = 1.0 / math.sqrt(S)
    wqkv = jnp.concatenate([params["wq"] * inv_scale, params["wk"], params["wv"]], axis=1)
    bqkv = jnp.concatenate([params["bq"] * inv_scale, params["bk"], params["bv"]], axis=1)

    def mm(w):  # matmul operands in compute dtype (bf16 default), f32 accumulation in-kernel
        return w.astype(cdt) if cdt != jnp.float32 else w

    weights = [mm(wqkv), bqkv, mm(params["wo"]), params["bo"],
               params["ln1w"], params["ln1b"],
               mm(params["w1"]), params["b1"], mm(params["w2"]), params["b2"],
               params["ln2w"], params["ln2b"]]

    # Flatten batch*seq so all position-wise matmuls / LayerNorms see a 2-D
    # (block_b*S, D) slab.  At real sizes keep D a multiple of 128 (it is at
    # BERT-base) so the output store is lane-dense.
    x2 = x.reshape(B * S, D)

    kernel = functools.partial(encoder_kernel, num_heads=num_heads, dim_head=dim_head,
                               seq_len=S, block_b=block_b, compute_dtype=cdt)

    def rep(shape):  # replicated (weight) block: full array, block index fixed at 0
        nd = len(shape)
        return pl.BlockSpec(shape, lambda g, vl, _nd=nd: (0,) * _nd)

    in_specs = ([pl.BlockSpec((block_b * S, D), lambda g, vl: (g, 0))]
                + [rep(tuple(w.shape)) for w in weights])
    out_spec = pl.BlockSpec((block_b * S, D), lambda g, vl: (g, 0))

    out2 = pl.pallas_call(
        kernel,
        out_shape=jax.ShapeDtypeStruct((B * S, D), jnp.float32),
        grid_spec=pltpu.PrefetchScalarGridSpec(
            num_scalar_prefetch=1,            # valid_len -> SMEM, no (B,S,S) mask DMA
            grid=(B // block_b,),
            in_specs=in_specs,
            out_specs=out_spec,
        ),
        compiler_params=pltpu.CompilerParams(
            dimension_semantics=("parallel",),        # batch steps are independent
            vmem_limit_bytes=vmem_limit_bytes,
        ),
    )(valid_len.astype(jnp.int32), x2, *weights)
    return out2.reshape(B, S, D)


# ---------------- pure-JAX reference (mirrors the PyTorch forward) ----------------
def encoder_ref(x, mask, params, num_heads, dim_head):
    hp = lax.Precision.HIGHEST
    S = x.shape[1]
    q = jnp.dot(x, params["wq"], precision=hp) + params["bq"]
    k = jnp.dot(x, params["wk"], precision=hp) + params["bk"]
    v = jnp.dot(x, params["wv"], precision=hp) + params["bv"]
    scale = math.sqrt(S)
    heads = []
    for h in range(num_heads):
        sl = slice(h * dim_head, (h + 1) * dim_head)
        s = jnp.einsum("bsd,btd->bst", q[..., sl], k[..., sl], precision=hp) / scale
        s = jnp.where(mask != 0, -1e9, s)
        p = jax.nn.softmax(s, axis=-1)
        heads.append(jnp.einsum("bst,btd->bsd", p, v[..., sl], precision=hp))
    ctx = jnp.concatenate(heads, axis=-1)
    a = jnp.dot(ctx, params["wo"], precision=hp) + params["bo"]
    a = _layer_norm(a, params["ln1w"], params["ln1b"])
    h1 = jnp.dot(a, params["w1"], precision=hp) + params["b1"]
    h1 = jax.nn.gelu(h1, approximate=False)          # nn.GELU() default = exact erf
    h2 = jnp.dot(h1, params["w2"], precision=hp) + params["b2"]
    return _layer_norm(h2, params["ln2w"], params["ln2b"])


if __name__ == "__main__":
    B, S, D_IN, D_OUT, H = 2, 8, 32, 16, 4  # batch, seq, dim_inp, dim_out(per-head/ffn), heads

    key = jax.random.PRNGKey(0)
    keys = jax.random.split(key, 12)

    def linear(k, fan_in, fan_out):
        kw, kb = jax.random.split(k)
        w = jax.random.normal(kw, (fan_in, fan_out), jnp.float32) / math.sqrt(fan_in)
        b = 0.1 * jax.random.normal(kb, (1, fan_out), jnp.float32)
        return w, b

    params = {}
    params["wq"], params["bq"] = linear(keys[0], D_IN, H * D_OUT)
    params["wk"], params["bk"] = linear(keys[1], D_IN, H * D_OUT)
    params["wv"], params["bv"] = linear(keys[2], D_IN, H * D_OUT)
    params["wo"], params["bo"] = linear(keys[3], H * D_OUT, D_IN)
    params["ln1w"] = 1.0 + 0.05 * jax.random.normal(keys[4], (1, D_IN), jnp.float32)
    params["ln1b"] = 0.05 * jax.random.normal(keys[5], (1, D_IN), jnp.float32)
    params["w1"], params["b1"] = linear(keys[6], D_IN, D_OUT)
    params["w2"], params["b2"] = linear(keys[7], D_OUT, D_IN)
    params["ln2w"] = 1.0 + 0.05 * jax.random.normal(keys[8], (1, D_IN), jnp.float32)
    params["ln2b"] = 0.05 * jax.random.normal(keys[9], (1, D_IN), jnp.float32)

    x = jax.random.normal(keys[10], (B, S, D_IN), jnp.float32)

    # Padding-style mask: key position >= valid_len[b] is masked (as in masked_fill_).
    valid_len = jnp.array([8, 6], dtype=jnp.int32)

    # Dense mask only for the PyTorch-mirroring reference.
    j = jnp.arange(S)
    mask = jnp.broadcast_to(
        (j[None, None, :] >= valid_len[:, None, None]), (B, S, S)
    ).astype(jnp.int32)
    ref = encoder_ref(x, mask, params, H, D_OUT)

    # Default path: bf16 matmul operands, f32 accumulation, 2 grid steps (v7x-friendly).
    out_bf16 = encoder_forward(x, valid_len, params, H, D_OUT)
    out_bf16 = jax.block_until_ready(out_bf16)
    assert out_bf16.shape == (B, S, D_IN)
    err_bf16 = float(jnp.max(jnp.abs(out_bf16 - ref)))
    assert err_bf16 < 3e-1, f"bf16 path mismatch vs reference: {err_bf16}"

    # f32 path (tighter check; residual error is tanh-GELU + approx-reciprocal).
    out_f32 = encoder_forward(x, valid_len, params, H, D_OUT,
                              matmul_dtype=jnp.float32)
    out_f32 = jax.block_until_ready(out_f32)
    err_f32 = float(jnp.max(jnp.abs(out_f32 - ref)))
    assert err_f32 < 5e-2, f"f32 path mismatch vs reference: {err_f32}"

    print("KERNEL_OK")
</pallas_src>

<mosaic_0001>
module attributes {stable_mosaic.version = 11 : i64} {
  func.func @encoder_kernel(%arg0: i32, %arg1: memref<2xi32, #tpu.memory_space<smem>>, %arg2: memref<8x32xf32, #tpu.memory_space<vmem>>, %arg3: memref<32x192xbf16, #tpu.memory_space<vmem>>, %arg4: memref<1x192xf32, #tpu.memory_space<vmem>>, %arg5: memref<64x32xbf16, #tpu.memory_space<vmem>>, %arg6: memref<1x32xf32, #tpu.memory_space<vmem>>, %arg7: memref<1x32xf32, #tpu.memory_space<vmem>>, %arg8: memref<1x32xf32, #tpu.memory_space<vmem>>, %arg9: memref<32x16xbf16, #tpu.memory_space<vmem>>, %arg10: memref<1x16xf32, #tpu.memory_space<vmem>>, %arg11: memref<16x32xbf16, #tpu.memory_space<vmem>>, %arg12: memref<1x32xf32, #tpu.memory_space<vmem>>, %arg13: memref<1x32xf32, #tpu.memory_space<vmem>>, %arg14: memref<1x32xf32, #tpu.memory_space<vmem>>, %arg15: memref<8x32xf32, #tpu.memory_space<vmem>>) attributes {dimension_semantics = [#tpu.dimension_semantics<parallel>], iteration_bounds = array<i64: 2>, scalar_prefetch = 1 : i64, scratch_operands = 0 : i64, tpu.core_type = #tpu.core_type<tc>, window_params = [{transform_indices = @transform_0, window_bounds = array<i64: 8, 32>}, {pipeline_mode = #tpu.pipeline_mode<synchronous>, transform_indices = @transform_1, window_bounds = array<i64: 32, 192>}, {pipeline_mode = #tpu.pipeline_mode<synchronous>, transform_indices = @transform_2, window_bounds = array<i64: 1, 192>}, {pipeline_mode = #tpu.pipeline_mode<synchronous>, transform_indices = @transform_3, window_bounds = array<i64: 64, 32>}, {pipeline_mode = #tpu.pipeline_mode<synchronous>, transform_indices = @transform_4, window_bounds = array<i64: 1, 32>}, {pipeline_mode = #tpu.pipeline_mode<synchronous>, transform_indices = @transform_5, window_bounds = array<i64: 1, 32>}, {pipeline_mode = #tpu.pipeline_mode<synchronous>, transform_indices = @transform_6, window_bounds = array<i64: 1, 32>}, {pipeline_mode = #tpu.pipeline_mode<synchronous>, transform_indices = @transform_7, window_bounds = array<i64: 32, 16>}, {pipeline_mode = #tpu.pipeline_mode<synchronous>, transform_indices = @transform_8, window_bounds = array<i64: 1, 16>}, {pipeline_mode = #tpu.pipeline_mode<synchronous>, transform_indices = @transform_9, window_bounds = array<i64: 16, 32>}, {pipeline_mode = #tpu.pipeline_mode<synchronous>, transform_indices = @transform_10, window_bounds = array<i64: 1, 32>}, {pipeline_mode = #tpu.pipeline_mode<synchronous>, transform_indices = @transform_11, window_bounds = array<i64: 1, 32>}, {pipeline_mode = #tpu.pipeline_mode<synchronous>, transform_indices = @transform_12, window_bounds = array<i64: 1, 32>}, {transform_indices = @transform_13, window_bounds = array<i64: 8, 32>}]} {
    %c0 = arith.constant 0 : index
    %c0_0 = arith.constant 0 : index
    %0 = vector.load %arg2[%c0, %c0_0] : memref<8x32xf32, #tpu.memory_space<vmem>>, vector<8x32xf32>
    %1 = arith.truncf %0 : vector<8x32xf32> to vector<8x32xbf16>
    %c0_1 = arith.constant 0 : index
    %c0_2 = arith.constant 0 : index
    %2 = vector.load %arg3[%c0_1, %c0_2] : memref<32x192xbf16, #tpu.memory_space<vmem>>, vector<32x192xbf16>
    %cst = arith.constant dense<0.000000e+00> : vector<8x192xf32>
    %3 = tpu.matmul %1, %2, %cst {dimension_numbers = #tpu.dot_dimension_numbers<[1], [0], [0], [1], [0, 0, 1, 1], [], []>} : vector<8x32xbf16>, vector<32x192xbf16>, vector<8x192xf32> -> vector<8x192xf32>
    %c0_3 = arith.constant 0 : index
    %c0_4 = arith.constant 0 : index
    %4 = vector.load %arg4[%c0_3, %c0_4] : memref<1x192xf32, #tpu.memory_space<vmem>>, vector<1x192xf32>
    %5 = vector.broadcast %4 : vector<1x192xf32> to vector<8x192xf32>
    %6 = arith.addf %3, %5 : vector<8x192xf32>
    %7 = vector.shape_cast %6 : vector<8x192xf32> to vector<1x8x192xf32>
    %8 = arith.truncf %7 : vector<1x8x192xf32> to vector<1x8x192xbf16>
    %9 = tpu.iota {dimensions = array<i32: 2>} : vector<1x1x8xi32>
    %10 = tpu.iota {dimensions = array<i32: 0>} : vector<1x1x8xi32>
    %c0_i32 = arith.constant 0 : i32
    %11 = vector.broadcast %c0_i32 : i32 to vector<1x1x8xi32>
    %c0_i32_5 = arith.constant 0 : i32
    %12 = vector.broadcast %c0_i32_5 : i32 to vector<1x1x8xi32>
    %13 = arith.cmpi eq, %10, %12 : vector<1x1x8xi32>
    %c1_i32 = arith.constant 1 : i32
    %14 = arith.muli %arg0, %c1_i32 : i32
    %c0_i32_6 = arith.constant 0 : i32
    %15 = arith.addi %14, %c0_i32_6 : i32
    %16 = arith.index_cast %15 : i32 to index
    %17 = memref.load %arg1[%16] : memref<2xi32, #tpu.memory_space<smem>>
    %18 = vector.broadcast %17 : i32 to vector<1x1x8xi32>
    %19 = arith.select %13, %18, %11 : vector<1x1x8xi1>, vector<1x1x8xi32>
    %20 = arith.cmpi sge, %9, %19 : vector<1x1x8xi32>
    %cst_7 = arith.constant 0.000000e+00 : f32
    %21 = vector.broadcast %cst_7 : f32 to vector<8x32xf32>
    %22 = vector.extract_strided_slice %8 {offsets = [0, 0, 0], sizes = [1, 8, 16], strides = [1, 1, 1]} : vector<1x8x192xbf16> to vector<1x8x16xbf16>
    %23 = vector.extract_strided_slice %8 {offsets = [0, 0, 64], sizes = [1, 8, 16], strides = [1, 1, 1]} : vector<1x8x192xbf16> to vector<1x8x16xbf16>
    %24 = vector.extract_strided_slice %8 {offsets = [0, 0, 128], sizes = [1, 8, 16], strides = [1, 1, 1]} : vector<1x8x192xbf16> to vector<1x8x16xbf16>
    "tpu.trace_start"() <{level = 10 : i32, message = "bqd,bkd->bqk"}> : () -> ()
    %cst_8 = arith.constant dense<0.000000e+00> : vector<1x8x8xf32>
    %25 = tpu.matmul %22, %23, %cst_8 {dimension_numbers = #tpu.dot_dimension_numbers<[2], [2], [1], [1], [0, 0, 0, 1, 1, 1], [0], [0]>} : vector<1x8x16xbf16>, vector<1x8x16xbf16>, vector<1x8x8xf32> -> vector<1x8x8xf32>
    %cst_9 = arith.constant -1.000000e+09 : f32
    "tpu.trace_stop"() : () -> ()
    %26 = vector.shape_cast %20 : vector<1x1x8xi1> to vector<1x1x8xi1>
    %27 = vector.broadcast %26 : vector<1x1x8xi1> to vector<1x8x8xi1>
    %28 = vector.broadcast %cst_9 : f32 to vector<1x8x8xf32>
    %29 = arith.select %27, %28, %25 : vector<1x8x8xi1>, vector<1x8x8xf32>
    %cst_10 = arith.constant dense<0xFF800000> : vector<1x8xf32>
    %30 = vector.multi_reduction <maximumf>, %29, %cst_10 [2] : vector<1x8x8xf32> to vector<1x8xf32>
    %31 = vector.shape_cast %30 : vector<1x8xf32> to vector<1x8x1xf32>
    %32 = vector.broadcast %31 : vector<1x8x1xf32> to vector<1x8x8xf32>
    %33 = arith.subf %29, %32 : vector<1x8x8xf32>
    %34 = math.exp %33 : vector<1x8x8xf32>
    %cst_11 = arith.constant dense<0.000000e+00> : vector<1x8xf32>
    %35 = vector.multi_reduction <add>, %34, %cst_11 [2] : vector<1x8x8xf32> to vector<1x8xf32>
    %36 = vector.shape_cast %35 : vector<1x8xf32> to vector<1x8x1xf32>
    %37 = tpu.reciprocal %36 {approx = true} : vector<1x8x1xf32> -> vector<1x8x1xf32>
    %38 = vector.broadcast %37 : vector<1x8x1xf32> to vector<1x8x8xf32>
    %39 = arith.mulf %34, %38 : vector<1x8x8xf32>
    %40 = arith.truncf %39 : vector<1x8x8xf32> to vector<1x8x8xbf16>
    "tpu.trace_start"() <{level = 10 : i32, message = "bqk,bkd->bqd"}> : () -> ()
    %cst_12 = arith.constant dense<0.000000e+00> : vector<1x8x16xf32>
    %41 = tpu.matmul %40, %24, %cst_12 {dimension_numbers = #tpu.dot_dimension_numbers<[2], [1], [1], [2], [0, 0, 0, 1, 1, 2], [0], [0]>} : vector<1x8x8xbf16>, vector<1x8x16xbf16>, vector<1x8x16xf32> -> vector<1x8x16xf32>
    "tpu.trace_stop"() : () -> ()
    %42 = vector.shape_cast %41 : vector<1x8x16xf32> to vector<8x16xf32>
    %43 = arith.truncf %42 : vector<8x16xf32> to vector<8x16xbf16>
    %c0_13 = arith.constant 0 : index
    %c0_14 = arith.constant 0 : index
    %44 = vector.load %arg5[%c0_13, %c0_14] : memref<64x32xbf16, #tpu.memory_space<vmem>>, vector<16x32xbf16>
    %cst_15 = arith.constant dense<0.000000e+00> : vector<8x32xf32>
    %45 = tpu.matmul %43, %44, %cst_15 {dimension_numbers = #tpu.dot_dimension_numbers<[1], [0], [0], [1], [0, 0, 1, 1], [], []>} : vector<8x16xbf16>, vector<16x32xbf16>, vector<8x32xf32> -> vector<8x32xf32>
    %46 = arith.addf %21, %45 : vector<8x32xf32>
    %47 = vector.extract_strided_slice %8 {offsets = [0, 0, 16], sizes = [1, 8, 16], strides = [1, 1, 1]} : vector<1x8x192xbf16> to vector<1x8x16xbf16>
    %48 = vector.extract_strided_slice %8 {offsets = [0, 0, 80], sizes = [1, 8, 16], strides = [1, 1, 1]} : vector<1x8x192xbf16> to vector<1x8x16xbf16>
    %49 = vector.extract_strided_slice %8 {offsets = [0, 0, 144], sizes = [1, 8, 16], strides = [1, 1, 1]} : vector<1x8x192xbf16> to vector<1x8x16xbf16>
    "tpu.trace_start"() <{level = 10 : i32, message = "bqd,bkd->bqk"}> : () -> ()
    %cst_16 = arith.constant dense<0.000000e+00> : vector<1x8x8xf32>
    %50 = tpu.matmul %47, %48, %cst_16 {dimension_numbers = #tpu.dot_dimension_numbers<[2], [2], [1], [1], [0, 0, 0, 1, 1, 1], [0], [0]>} : vector<1x8x16xbf16>, vector<1x8x16xbf16>, vector<1x8x8xf32> -> vector<1x8x8xf32>
    %cst_17 = arith.constant -1.000000e+09 : f32
    "tpu.trace_stop"() : () -> ()
    %51 = vector.shape_cast %20 : vector<1x1x8xi1> to vector<1x1x8xi1>
    %52 = vector.broadcast %51 : vector<1x1x8xi1> to vector<1x8x8xi1>
    %53 = vector.broadcast %cst_17 : f32 to vector<1x8x8xf32>
    %54 = arith.select %52, %53, %50 : vector<1x8x8xi1>, vector<1x8x8xf32>
    %cst_18 = arith.constant dense<0xFF800000> : vector<1x8xf32>
    %55 = vector.multi_reduction <maximumf>, %54, %cst_18 [2] : vector<1x8x8xf32> to vector<1x8xf32>
    %56 = vector.shape_cast %55 : vector<1x8xf32> to vector<1x8x1xf32>
    %57 = vector.broadcast %56 : vector<1x8x1xf32> to vector<1x8x8xf32>
    %58 = arith.subf %54, %57 : vector<1x8x8xf32>
    %59 = math.exp %58 : vector<1x8x8xf32>
    %cst_19 = arith.constant dense<0.000000e+00> : vector<1x8xf32>
    %60 = vector.multi_reduction <add>, %59, %cst_19 [2] : vector<1x8x8xf32> to vector<1x8xf32>
    %61 = vector.shape_cast %60 : vector<1x8xf32> to vector<1x8x1xf32>
    %62 = tpu.reciprocal %61 {approx = true} : vector<1x8x1xf32> -> vector<1x8x1xf32>
    %63 = vector.broadcast %62 : vector<1x8x1xf32> to vector<1x8x8xf32>
    %64 = arith.mulf %59, %63 : vector<1x8x8xf32>
    %65 = arith.truncf %64 : vector<1x8x8xf32> to vector<1x8x8xbf16>
    "tpu.trace_start"() <{level = 10 : i32, message = "bqk,bkd->bqd"}> : () -> ()
    %cst_20 = arith.constant dense<0.000000e+00> : vector<1x8x16xf32>
    %66 = tpu.matmul %65, %49, %cst_20 {dimension_numbers = #tpu.dot_dimension_numbers<[2], [1], [1], [2], [0, 0, 0, 1, 1, 2], [0], [0]>} : vector<1x8x8xbf16>, vector<1x8x16xbf16>, vector<1x8x16xf32> -> vector<1x8x16xf32>
    "tpu.trace_stop"() : () -> ()
    %67 = vector.shape_cast %66 : vector<1x8x16xf32> to vector<8x16xf32>
    %68 = arith.truncf %67 : vector<8x16xf32> to vector<8x16xbf16>
    %c16 = arith.constant 16 : index
    %c0_21 = arith.constant 0 : index
    %69 = vector.load %arg5[%c16, %c0_21] : memref<64x32xbf16, #tpu.memory_space<vmem>>, vector<16x32xbf16>
    %cst_22 = arith.constant dense<0.000000e+00> : vector<8x32xf32>
    %70 = tpu.matmul %68, %69, %cst_22 {dimension_numbers = #tpu.dot_dimension_numbers<[1], [0], [0], [1], [0, 0, 1, 1], [], []>} : vector<8x16xbf16>, vector<16x32xbf16>, vector<8x32xf32> -> vector<8x32xf32>
    %71 = arith.addf %46, %70 : vector<8x32xf32>
    %72 = vector.extract_strided_slice %8 {offsets = [0, 0, 32], sizes = [1, 8, 16], strides = [1, 1, 1]} : vector<1x8x192xbf16> to vector<1x8x16xbf16>
    %73 = vector.extract_strided_slice %8 {offsets = [0, 0, 96], sizes = [1, 8, 16], strides = [1, 1, 1]} : vector<1x8x192xbf16> to vector<1x8x16xbf16>
    %74 = vector.extract_strided_slice %8 {offsets = [0, 0, 160], sizes = [1, 8, 16], strides = [1, 1, 1]} : vector<1x8x192xbf16> to vector<1x8x16xbf16>
    "tpu.trace_start"() <{level = 10 : i32, message = "bqd,bkd->bqk"}> : () -> ()
    %cst_23 = arith.constant dense<0.000000e+00> : vector<1x8x8xf32>
    %75 = tpu.matmul %72, %73, %cst_23 {dimension_numbers = #tpu.dot_dimension_numbers<[2], [2], [1], [1], [0, 0, 0, 1, 1, 1], [0], [0]>} : vector<1x8x16xbf16>, vector<1x8x16xbf16>, vector<1x8x8xf32> -> vector<1x8x8xf32>
    %cst_24 = arith.constant -1.000000e+09 : f32
    "tpu.trace_stop"() : () -> ()
    %76 = vector.shape_cast %20 : vector<1x1x8xi1> to vector<1x1x8xi1>
    %77 = vector.broadcast %76 : vector<1x1x8xi1> to vector<1x8x8xi1>
    %78 = vector.broadcast %cst_24 : f32 to vector<1x8x8xf32>
    %79 = arith.select %77, %78, %75 : vector<1x8x8xi1>, vector<1x8x8xf32>
    %cst_25 = arith.constant dense<0xFF800000> : vector<1x8xf32>
    %80 = vector.multi_reduction <maximumf>, %79, %cst_25 [2] : vector<1x8x8xf32> to vector<1x8xf32>
    %81 = vector.shape_cast %80 : vector<1x8xf32> to vector<1x8x1xf32>
    %82 = vector.broadcast %81 : vector<1x8x1xf32> to vector<1x8x8xf32>
    %83 = arith.subf %79, %82 : vector<1x8x8xf32>
    %84 = math.exp %83 : vector<1x8x8xf32>
    %cst_26 = arith.constant dense<0.000000e+00> : vector<1x8xf32>
    %85 = vector.multi_reduction <add>, %84, %cst_26 [2] : vector<1x8x8xf32> to vector<1x8xf32>
    %86 = vector.shape_cast %85 : vector<1x8xf32> to vector<1x8x1xf32>
    %87 = tpu.reciprocal %86 {approx = true} : vector<1x8x1xf32> -> vector<1x8x1xf32>
    %88 = vector.broadcast %87 : vector<1x8x1xf32> to vector<1x8x8xf32>
    %89 = arith.mulf %84, %88 : vector<1x8x8xf32>
    %90 = arith.truncf %89 : vector<1x8x8xf32> to vector<1x8x8xbf16>
    "tpu.trace_start"() <{level = 10 : i32, message = "bqk,bkd->bqd"}> : () -> ()
    %cst_27 = arith.constant dense<0.000000e+00> : vector<1x8x16xf32>
    %91 = tpu.matmul %90, %74, %cst_27 {dimension_numbers = #tpu.dot_dimension_numbers<[2], [1], [1], [2], [0, 0, 0, 1, 1, 2], [0], [0]>} : vector<1x8x8xbf16>, vector<1x8x16xbf16>, vector<1x8x16xf32> -> vector<1x8x16xf32>
    "tpu.trace_stop"() : () -> ()
    %92 = vector.shape_cast %91 : vector<1x8x16xf32> to vector<8x16xf32>
    %93 = arith.truncf %92 : vector<8x16xf32> to vector<8x16xbf16>
    %c32 = arith.constant 32 : index
    %c0_28 = arith.constant 0 : index
    %94 = vector.load %arg5[%c32, %c0_28] : memref<64x32xbf16, #tpu.memory_space<vmem>>, vector<16x32xbf16>
    %cst_29 = arith.constant dense<0.000000e+00> : vector<8x32xf32>
    %95 = tpu.matmul %93, %94, %cst_29 {dimension_numbers = #tpu.dot_dimension_numbers<[1], [0], [0], [1], [0, 0, 1, 1], [], []>} : vector<8x16xbf16>, vector<16x32xbf16>, vector<8x32xf32> -> vector<8x32xf32>
    %96 = arith.addf %71, %95 : vector<8x32xf32>
    %97 = vector.extract_strided_slice %8 {offsets = [0, 0, 48], sizes = [1, 8, 16], strides = [1, 1, 1]} : vector<1x8x192xbf16> to vector<1x8x16xbf16>
    %98 = vector.extract_strided_slice %8 {offsets = [0, 0, 112], sizes = [1, 8, 16], strides = [1, 1, 1]} : vector<1x8x192xbf16> to vector<1x8x16xbf16>
    %99 = vector.extract_strided_slice %8 {offsets = [0, 0, 176], sizes = [1, 8, 16], strides = [1, 1, 1]} : vector<1x8x192xbf16> to vector<1x8x16xbf16>
    "tpu.trace_start"() <{level = 10 : i32, message = "bqd,bkd->bqk"}> : () -> ()
    %cst_30 = arith.constant dense<0.000000e+00> : vector<1x8x8xf32>
    %100 = tpu.matmul %97, %98, %cst_30 {dimension_numbers = #tpu.dot_dimension_numbers<[2], [2], [1], [1], [0, 0, 0, 1, 1, 1], [0], [0]>} : vector<1x8x16xbf16>, vector<1x8x16xbf16>, vector<1x8x8xf32> -> vector<1x8x8xf32>
    %cst_31 = arith.constant -1.000000e+09 : f32
    "tpu.trace_stop"() : () -> ()
    %101 = vector.shape_cast %20 : vector<1x1x8xi1> to vector<1x1x8xi1>
    %102 = vector.broadcast %101 : vector<1x1x8xi1> to vector<1x8x8xi1>
    %103 = vector.broadcast %cst_31 : f32 to vector<1x8x8xf32>
    %104 = arith.select %102, %103, %100 : vector<1x8x8xi1>, vector<1x8x8xf32>
    %cst_32 = arith.constant dense<0xFF800000> : vector<1x8xf32>
    %105 = vector.multi_reduction <maximumf>, %104, %cst_32 [2] : vector<1x8x8xf32> to vector<1x8xf32>
    %106 = vector.shape_cast %105 : vector<1x8xf32> to vector<1x8x1xf32>
    %107 = vector.broadcast %106 : vector<1x8x1xf32> to vector<1x8x8xf32>
    %108 = arith.subf %104, %107 : vector<1x8x8xf32>
    %109 = math.exp %108 : vector<1x8x8xf32>
    %cst_33 = arith.constant dense<0.000000e+00> : vector<1x8xf32>
    %110 = vector.multi_reduction <add>, %109, %cst_33 [2] : vector<1x8x8xf32> to vector<1x8xf32>
    %111 = vector.shape_cast %110 : vector<1x8xf32> to vector<1x8x1xf32>
    %112 = tpu.reciprocal %111 {approx = true} : vector<1x8x1xf32> -> vector<1x8x1xf32>
    %113 = vector.broadcast %112 : vector<1x8x1xf32> to vector<1x8x8xf32>
    %114 = arith.mulf %109, %113 : vector<1x8x8xf32>
    %115 = arith.truncf %114 : vector<1x8x8xf32> to vector<1x8x8xbf16>
    "tpu.trace_start"() <{level = 10 : i32, message = "bqk,bkd->bqd"}> : () -> ()
    %cst_34 = arith.constant dense<0.000000e+00> : vector<1x8x16xf32>
    %116 = tpu.matmul %115, %99, %cst_34 {dimension_numbers = #tpu.dot_dimension_numbers<[2], [1], [1], [2], [0, 0, 0, 1, 1, 2], [0], [0]>} : vector<1x8x8xbf16>, vector<1x8x16xbf16>, vector<1x8x16xf32> -> vector<1x8x16xf32>
    "tpu.trace_stop"() : () -> ()
    %117 = vector.shape_cast %116 : vector<1x8x16xf32> to vector<8x16xf32>
    %118 = arith.truncf %117 : vector<8x16xf32> to vector<8x16xbf16>
    %c48 = arith.constant 48 : index
    %c0_35 = arith.constant 0 : index
    %119 = vector.load %arg5[%c48, %c0_35] : memref<64x32xbf16, #tpu.memory_space<vmem>>, vector<16x32xbf16>
    %cst_36 = arith.constant dense<0.000000e+00> : vector<8x32xf32>
    %120 = tpu.matmul %118, %119, %cst_36 {dimension_numbers = #tpu.dot_dimension_numbers<[1], [0], [0], [1], [0, 0, 1, 1], [], []>} : vector<8x16xbf16>, vector<16x32xbf16>, vector<8x32xf32> -> vector<8x32xf32>
    %121 = arith.addf %96, %120 : vector<8x32xf32>
    %c0_37 = arith.constant 0 : index
    %c0_38 = arith.constant 0 : index
    %122 = vector.load %arg6[%c0_37, %c0_38] : memref<1x32xf32, #tpu.memory_space<vmem>>, vector<1x32xf32>
    %123 = vector.broadcast %122 : vector<1x32xf32> to vector<8x32xf32>
    %124 = arith.addf %121, %123 : vector<8x32xf32>
    %c0_39 = arith.constant 0 : index
    %c0_40 = arith.constant 0 : index
    %125 = vector.load %arg7[%c0_39, %c0_40] : memref<1x32xf32, #tpu.memory_space<vmem>>, vector<1x32xf32>
    %c0_41 = arith.constant 0 : index
    %c0_42 = arith.constant 0 : index
    %126 = vector.load %arg8[%c0_41, %c0_42] : memref<1x32xf32, #tpu.memory_space<vmem>>, vector<1x32xf32>
    %cst_43 = arith.constant dense<0.000000e+00> : vector<8xf32>
    %127 = vector.multi_reduction <add>, %124, %cst_43 [1] : vector<8x32xf32> to vector<8xf32>
    %128 = vector.shape_cast %127 : vector<8xf32> to vector<8x1xf32>
    %cst_44 = arith.constant 3.200000e+01 : f32
    %129 = vector.broadcast %cst_44 : f32 to vector<8x1xf32>
    %130 = arith.divf %128, %129 : vector<8x1xf32>
    %131 = vector.broadcast %130 : vector<8x1xf32> to vector<8x32xf32>
    %132 = arith.subf %124, %131 : vector<8x32xf32>
    %133 = arith.mulf %132, %132 : vector<8x32xf32>
    %cst_45 = arith.constant dense<0.000000e+00> : vector<8xf32>
    %134 = vector.multi_reduction <add>, %133, %cst_45 [1] : vector<8x32xf32> to vector<8xf32>
    %135 = vector.shape_cast %134 : vector<8xf32> to vector<8x1xf32>
    %cst_46 = arith.constant 3.200000e+01 : f32
    %136 = vector.broadcast %cst_46 : f32 to vector<8x1xf32>
    %137 = arith.divf %135, %136 : vector<8x1xf32>
    %cst_47 = arith.constant 9.99999974E-6 : f32
    %138 = vector.broadcast %cst_47 : f32 to vector<8x1xf32>
    %139 = arith.addf %137, %138 : vector<8x1xf32>
    %140 = math.rsqrt %139 : vector<8x1xf32>
    %141 = vector.broadcast %140 : vector<8x1xf32> to vector<8x32xf32>
    %142 = arith.mulf %132, %141 : vector<8x32xf32>
    %143 = vector.broadcast %125 : vector<1x32xf32> to vector<8x32xf32>
    %144 = arith.mulf %142, %143 : vector<8x32xf32>
    %145 = vector.broadcast %126 : vector<1x32xf32> to vector<8x32xf32>
    %146 = arith.addf %144, %145 : vector<8x32xf32>
    %147 = arith.truncf %146 : vector<8x32xf32> to vector<8x32xbf16>
    %c0_48 = arith.constant 0 : index
    %c0_49 = arith.constant 0 : index
    %148 = vector.load %arg9[%c0_48, %c0_49] : memref<32x16xbf16, #tpu.memory_space<vmem>>, vector<32x16xbf16>
    %cst_50 = arith.constant dense<0.000000e+00> : vector<8x16xf32>
    %149 = tpu.matmul %147, %148, %cst_50 {dimension_numbers = #tpu.dot_dimension_numbers<[1], [0], [0], [1], [0, 0, 1, 1], [], []>} : vector<8x32xbf16>, vector<32x16xbf16>, vector<8x16xf32> -> vector<8x16xf32>
    %c0_51 = arith.constant 0 : index
    %c0_52 = arith.constant 0 : index
    %150 = vector.load %arg10[%c0_51, %c0_52] : memref<1x16xf32, #tpu.memory_space<vmem>>, vector<1x16xf32>
    %151 = vector.broadcast %150 : vector<1x16xf32> to vector<8x16xf32>
    %152 = arith.addf %149, %151 : vector<8x16xf32>
    %cst_53 = arith.constant 5.000000e-01 : f32
    %153 = vector.broadcast %cst_53 : f32 to vector<8x16xf32>
    %154 = arith.mulf %153, %152 : vector<8x16xf32>
    %cst_54 = arith.constant 4.471500e-02 : f32
    %155 = vector.broadcast %cst_54 : f32 to vector<8x16xf32>
    %156 = arith.mulf %155, %152 : vector<8x16xf32>
    %157 = arith.mulf %156, %152 : vector<8x16xf32>
    %158 = arith.mulf %157, %152 : vector<8x16xf32>
    %159 = arith.addf %152, %158 : vector<8x16xf32>
    %cst_55 = arith.constant 0.797884583 : f32
    %160 = vector.broadcast %cst_55 : f32 to vector<8x16xf32>
    %161 = arith.mulf %160, %159 : vector<8x16xf32>
    %162 = math.tanh %161 : vector<8x16xf32>
    %cst_56 = arith.constant 1.000000e+00 : f32
    %163 = vector.broadcast %cst_56 : f32 to vector<8x16xf32>
    %164 = arith.addf %163, %162 : vector<8x16xf32>
    %165 = arith.mulf %154, %164 : vector<8x16xf32>
    %166 = arith.truncf %165 : vector<8x16xf32> to vector<8x16xbf16>
    %c0_57 = arith.constant 0 : index
    %c0_58 = arith.constant 0 : index
    %167 = vector.load %arg11[%c0_57, %c0_58] : memref<16x32xbf16, #tpu.memory_space<vmem>>, vector<16x32xbf16>
    %cst_59 = arith.constant dense<0.000000e+00> : vector<8x32xf32>
    %168 = tpu.matmul %166, %167, %cst_59 {dimension_numbers = #tpu.dot_dimension_numbers<[1], [0], [0], [1], [0, 0, 1, 1], [], []>} : vector<8x16xbf16>, vector<16x32xbf16>, vector<8x32xf32> -> vector<8x32xf32>
    %c0_60 = arith.constant 0 : index
    %c0_61 = arith.constant 0 : index
    %169 = vector.load %arg12[%c0_60, %c0_61] : memref<1x32xf32, #tpu.memory_space<vmem>>, vector<1x32xf32>
    %170 = vector.broadcast %169 : vector<1x32xf32> to vector<8x32xf32>
    %171 = arith.addf %168, %170 : vector<8x32xf32>
    %c0_62 = arith.constant 0 : index
    %c0_63 = arith.constant 0 : index
    %172 = vector.load %arg13[%c0_62, %c0_63] : memref<1x32xf32, #tpu.memory_space<vmem>>, vector<1x32xf32>
    %c0_64 = arith.constant 0 : index
    %c0_65 = arith.constant 0 : index
    %173 = vector.load %arg14[%c0_64, %c0_65] : memref<1x32xf32, #tpu.memory_space<vmem>>, vector<1x32xf32>
    %cst_66 = arith.constant dense<0.000000e+00> : vector<8xf32>
    %174 = vector.multi_reduction <add>, %171, %cst_66 [1] : vector<8x32xf32> to vector<8xf32>
    %175 = vector.shape_cast %174 : vector<8xf32> to vector<8x1xf32>
    %cst_67 = arith.constant 3.200000e+01 : f32
    %176 = vector.broadcast %cst_67 : f32 to vector<8x1xf32>
    %177 = arith.divf %175, %176 : vector<8x1xf32>
    %178 = vector.broadcast %177 : vector<8x1xf32> to vector<8x32xf32>
    %179 = arith.subf %171, %178 : vector<8x32xf32>
    %180 = arith.mulf %179, %179 : vector<8x32xf32>
    %cst_68 = arith.constant dense<0.000000e+00> : vector<8xf32>
    %181 = vector.multi_reduction <add>, %180, %cst_68 [1] : vector<8x32xf32> to vector<8xf32>
    %182 = vector.shape_cast %181 : vector<8xf32> to vector<8x1xf32>
    %cst_69 = arith.constant 3.200000e+01 : f32
    %183 = vector.broadcast %cst_69 : f32 to vector<8x1xf32>
    %184 = arith.divf %182, %183 : vector<8x1xf32>
    %cst_70 = arith.constant 9.99999974E-6 : f32
    %185 = vector.broadcast %cst_70 : f32 to vector<8x1xf32>
    %186 = arith.addf %184, %185 : vector<8x1xf32>
    %187 = math.rsqrt %186 : vector<8x1xf32>
    %188 = vector.broadcast %187 : vector<8x1xf32> to vector<8x32xf32>
    %189 = arith.mulf %179, %188 : vector<8x32xf32>
    %190 = vector.broadcast %172 : vector<1x32xf32> to vector<8x32xf32>
    %191 = arith.mulf %189, %190 : vector<8x32xf32>
    %192 = vector.broadcast %173 : vector<1x32xf32> to vector<8x32xf32>
    %193 = arith.addf %191, %192 : vector<8x32xf32>
    %c0_71 = arith.constant 0 : index
    %c0_72 = arith.constant 0 : index
    %194 = vector.load %arg15[%c0_71, %c0_72] : memref<8x32xf32, #tpu.memory_space<vmem>>, vector<8x32xf32>
    tpu.vector_store %arg15[%c0_71, %c0_72], %193 {strides = array<i32>} : memref<8x32xf32, #tpu.memory_space<vmem>>, vector<8x32xf32>,
    return
  }
  func.func @transform_0(%arg0: i32, %arg1: memref<2xi32, #tpu.memory_space<smem>>) -> (i32, i32) {
    %c0_i32 = arith.constant 0 : i32
    %c0_i32_0 = arith.constant 0 : i32
    return %arg0, %c0_i32 : i32, i32
  }
  func.func @transform_1(%arg0: i32, %arg1: memref<2xi32, #tpu.memory_space<smem>>) -> (i32, i32) {
    %c0_i32 = arith.constant 0 : i32
    %c0_i32_0 = arith.constant 0 : i32
    %c0_i32_1 = arith.constant 0 : i32
    return %c0_i32, %c0_i32_0 : i32, i32
  }
  func.func @transform_2(%arg0: i32, %arg1: memref<2xi32, #tpu.memory_space<smem>>) -> (i32, i32) {
    %c0_i32 = arith.constant 0 : i32
    %c0_i32_0 = arith.constant 0 : i32
    %c0_i32_1 = arith.constant 0 : i32
    return %c0_i32, %c0_i32_0 : i32, i32
  }
  func.func @transform_3(%arg0: i32, %arg1: memref<2xi32, #tpu.memory_space<smem>>) -> (i32, i32) {
    %c0_i32 = arith.constant 0 : i32
    %c0_i32_0 = arith.constant 0 : i32
    %c0_i32_1 = arith.constant 0 : i32
    return %c0_i32, %c0_i32_0 : i32, i32
  }
  func.func @transform_4(%arg0: i32, %arg1: memref<2xi32, #tpu.memory_space<smem>>) -> (i32, i32) {
    %c0_i32 = arith.constant 0 : i32
    %c0_i32_0 = arith.constant 0 : i32
    %c0_i32_1 = arith.constant 0 : i32
    return %c0_i32, %c0_i32_0 : i32, i32
  }
  func.func @transform_5(%arg0: i32, %arg1: memref<2xi32, #tpu.memory_space<smem>>) -> (i32, i32) {
    %c0_i32 = arith.constant 0 : i32
    %c0_i32_0 = arith.constant 0 : i32
    %c0_i32_1 = arith.constant 0 : i32
    return %c0_i32, %c0_i32_0 : i32, i32
  }
  func.func @transform_6(%arg0: i32, %arg1: memref<2xi32, #tpu.memory_space<smem>>) -> (i32, i32) {
    %c0_i32 = arith.constant 0 : i32
    %c0_i32_0 = arith.constant 0 : i32
    %c0_i32_1 = arith.constant 0 : i32
    return %c0_i32, %c0_i32_0 : i32, i32
  }
  func.func @transform_7(%arg0: i32, %arg1: memref<2xi32, #tpu.memory_space<smem>>) -> (i32, i32) {
    %c0_i32 = arith.constant 0 : i32
    %c0_i32_0 = arith.constant 0 : i32
    %c0_i32_1 = arith.constant 0 : i32
    return %c0_i32, %c0_i32_0 : i32, i32
  }
  func.func @transform_8(%arg0: i32, %arg1: memref<2xi32, #tpu.memory_space<smem>>) -> (i32, i32) {
    %c0_i32 = arith.constant 0 : i32
    %c0_i32_0 = arith.constant 0 : i32
    %c0_i32_1 = arith.constant 0 : i32
    return %c0_i32, %c0_i32_0 : i32, i32
  }
  func.func @transform_9(%arg0: i32, %arg1: memref<2xi32, #tpu.memory_space<smem>>) -> (i32, i32) {
    %c0_i32 = arith.constant 0 : i32
    %c0_i32_0 = arith.constant 0 : i32
    %c0_i32_1 = arith.constant 0 : i32
    return %c0_i32, %c0_i32_0 : i32, i32
  }
  func.func @transform_10(%arg0: i32, %arg1: memref<2xi32, #tpu.memory_space<smem>>) -> (i32, i32) {
    %c0_i32 = arith.constant 0 : i32
    %c0_i32_0 = arith.constant 0 : i32
    %c0_i32_1 = arith.constant 0 : i32
    return %c0_i32, %c0_i32_0 : i32, i32
  }
  func.func @transform_11(%arg0: i32, %arg1: memref<2xi32, #tpu.memory_space<smem>>) -> (i32, i32) {
    %c0_i32 = arith.constant 0 : i32
    %c0_i32_0 = arith.constant 0 : i32
    %c0_i32_1 = arith.constant 0 : i32
    return %c0_i32, %c0_i32_0 : i32, i32
  }
  func.func @transform_12(%arg0: i32, %arg1: memref<2xi32, #tpu.memory_space<smem>>) -> (i32, i32) {
    %c0_i32 = arith.constant 0 : i32
    %c0_i32_0 = arith.constant 0 : i32
    %c0_i32_1 = arith.constant 0 : i32
    return %c0_i32, %c0_i32_0 : i32, i32
  }
  func.func @transform_13(%arg0: i32, %arg1: memref<2xi32, #tpu.memory_space<smem>>) -> (i32, i32) {
    %c0_i32 = arith.constant 0 : i32
    %c0_i32_0 = arith.constant 0 : i32
    return %arg0, %c0_i32 : i32, i32
  }
}

</mosaic_0001>

<llo_original>
// kernel: tpu_custom_call.1
$region0: #{tpu_custom_call.1}
  #allocation0 [shape = 'u32[]', space=smem, size = 0x4, offset = 0x4, fixed_abs, tag = 'smem constant byte address 0x4 - core index']
  #allocation1 [shape = 'u32[144,128]{1,0:T(1,128)}', space=vmem, size = 0x12000, scoped, tag = 'internal scratch']
  #allocation2 [shape = 's32[1]{0}', space=sflag, size = 0x4, scoped, tag = 'scoped memory for tpu_custom_call.1']
  #allocation3 [shape = 'u8[512]{0}', space=smem, size = 0x200, scoped, tag = 'prefetched SMEM operand 0']
  %s0 = inlined_call_operand.vmem [shape: s32[2], index: 0, kind: input, shape index: {}]
  %s1 = inlined_call_operand.vmem [shape: f32[16,32], index: 1, kind: input, shape index: {}]
  %s2 = inlined_call_operand.vmem [shape: bf16[32,192], index: 2, kind: input, shape index: {}]
  %s3 = inlined_call_operand.vmem [shape: f32[1,192], index: 3, kind: input, shape index: {}]
  %s4 = inlined_call_operand.vmem [shape: bf16[64,32], index: 4, kind: input, shape index: {}]
  %s5 = inlined_call_operand.vmem [shape: f32[1,32], index: 5, kind: input, shape index: {}]
  %s6 = inlined_call_operand.vmem [shape: f32[1,32], index: 6, kind: input, shape index: {}]
  %s7 = inlined_call_operand.vmem [shape: f32[1,32], index: 7, kind: input, shape index: {}]
  %s8 = inlined_call_operand.vmem [shape: bf16[32,16], index: 8, kind: input, shape index: {}]
  %s9 = inlined_call_operand.vmem [shape: f32[1,16], index: 9, kind: input, shape index: {}]
  %s10 = inlined_call_operand.vmem [shape: bf16[16,32], index: 10, kind: input, shape index: {}]
  %s11 = inlined_call_operand.vmem [shape: f32[1,32], index: 11, kind: input, shape index: {}]
  %s12 = inlined_call_operand.vmem [shape: f32[1,32], index: 12, kind: input, shape index: {}]
  %s13 = inlined_call_operand.vmem [shape: f32[1,32], index: 13, kind: input, shape index: {}]
  %s14 = inlined_call_operand.hbm [shape: f32[16,32], index: 14, kind: output, shape index: {}]
  %s15 = sld [smem:[#allocation0]]
  $region85: #{tpu_custom_call.1} parent=0
    _
  %s17 = ssub.s32 1, %s15
  %s18 = scalar_select 0, %s17, %s15
  %s19 = sshll.u32 %s0, 4
  %s20 = int_to_ptr.vmem [resolvable:$true] %s19
  %22 = dma.vmem_to_smem %s20, 16, [#allocation3], [#allocation2]
  %23 = dma.done [#allocation2], 16
  %24 = sfence
  $region1: #{tpu_custom_call.1} parent=0
    #allocation4 [shape = 'u8[8192]{0}', space=vmem, size = 0x2000, scoped, tag = 'output window, operand 0']
    #allocation5 [shape = 's32[2]{0}', space=sflag, size = 0x8, scoped, tag = 'scoped memory for tpu_custom_call.1']
    %25 = vsyncpa [#allocation5], 0
    %s26 = scalar_lea.sflag [#allocation5], 1
    %27 = vsyncpa %s26, 0
    loop: start=0, step=1, limit=4
    $region2: #{tpu_custom_call.1} parent=1 // loop_pre_header
      _
    $region3: #{tpu_custom_call.1} parent=1 // loop_header
      %s29 = sphi 0, %s33
      %p30 = scmp.ge.s32.totalorder %s29, 4
      %s39 = sphi 0, %s41
      %s42 = sphi 0, %s39
      %s43 = sphi 0, %s42
      %s59 = sphi 0, %s43
      %s63 = sphi 0, %s63
      %s65 = sphi 0, %s63
      %s66 = sphi 0, %s65
      %s80 = sphi 0, %s66
      %s84 = sphi 0, %s84
      %s86 = sphi 0, %s84
      %s87 = sphi 0, %s86
      %s101 = sphi 0, %s87
      %s105 = sphi 0, %s105
      %s107 = sphi 0, %s105
      %s108 = sphi 0, %s107
      %s122 = sphi 0, %s108
      %s126 = sphi 0, %s126
      %s128 = sphi 0, %s126
      %s129 = sphi 0, %s128
      %s143 = sphi 0, %s129
      %s147 = sphi 0, %s147
      %s149 = sphi 0, %s147
      %s150 = sphi 0, %s149
      %s164 = sphi 0, %s150
      %s168 = sphi 0, %s168
      %s170 = sphi 0, %s168
      %s171 = sphi 0, %s170
      %s185 = sphi 0, %s171
      %s189 = sphi 0, %s189
      %s191 = sphi 0, %s189
      %s192 = sphi 0, %s191
      %s206 = sphi 0, %s192
      %s210 = sphi 0, %s210
      %s212 = sphi 0, %s210
      %s213 = sphi 0, %s212
      %s227 = sphi 0, %s213
      %s231 = sphi 0, %s231
      %s233 = sphi 0, %s231
      %s234 = sphi 0, %s233
      %s248 = sphi 0, %s234
      %s252 = sphi 0, %s252
      %s254 = sphi 0, %s252
      %s255 = sphi 0, %s254
      %s269 = sphi 0, %s255
      %s273 = sphi 0, %s273
      %s275 = sphi 0, %s273
      %s276 = sphi 0, %s275
      %s290 = sphi 0, %s276
      %s294 = sphi 0, %s294
      %s296 = sphi 0, %s294
      %s297 = sphi 0, %s296
      %s311 = sphi 0, %s297
      %s317 = sphi 0, %s319
      %s320 = sphi 0, %s317
      %s321 = sphi 0, %s320
      %s337 = sphi 0, %s321
    $region4: #{tpu_custom_call.1} parent=1 // loop_header_branch
      %32 = sbr.rel (%p30) target = $region8
    $region5: #{tpu_custom_call.1} parent=1 // loop_body
      %s34 = ssub.s32 %s29, 1
      %s35 = ssub.s32 %s29, 2
      %s36 = sadd.s32 %s29, 1
      %s37 = ssub.s32 %s29, %s36
      %p38 = scmp.eq.s32.totalorder %s37, 0
      %s40 = sadd.s32 %s39, 1
      %s41 = scalar_select %p38, %s39, %s40
      %p44 = pneg %p38
      %p45 = scmp.eq.s32.totalorder %s29, 1
      %p46 = por %p44, %p45
      %p47 = scmp.ne.s32.totalorder %s39, %s42
      %p48 = scmp.eq.s32.totalorder %s29, 0
      %p49 = por %p47, %p48
      %p50 = scmp.ne.s32.totalorder %s39, %s42
      %p51 = scmp.eq.s32.totalorder %s34, 1
      %p52 = por %p50, %p51
      %p53 = scmp.ne.s32.totalorder %s42, %s43
      %p54 = scmp.eq.s32.totalorder %s34, 0
      %p55 = por %p53, %p54
      %p56 = scmp.ne.s32.totalorder %s42, %s43
      %p57 = scmp.eq.s32.totalorder %s35, 1
      %p58 = por %p56, %p57
      %p60 = scmp.ne.s32.totalorder %s43, %s59
      %p61 = scmp.eq.s32.totalorder %s35, 0
      %p62 = por %p60, %p61
      %s64 = sadd.s32 %s63, 1
      %p67 = scmp.eq.s32.totalorder %s29, 1
      %p68 = scmp.ne.s32.totalorder %s63, %s65
      %p69 = scmp.eq.s32.totalorder %s29, 0
      %p70 = por %p68, %p69
      %p71 = scmp.ne.s32.totalorder %s63, %s65
      %p72 = scmp.eq.s32.totalorder %s34, 1
      %p73 = por %p71, %p72
      %p74 = scmp.ne.s32.totalorder %s65, %s66
      %p75 = scmp.eq.s32.totalorder %s34, 0
      %p76 = por %p74, %p75
      %p77 = scmp.ne.s32.totalorder %s65, %s66
      %p78 = scmp.eq.s32.totalorder %s35, 1
      %p79 = por %p77, %p78
      %p81 = scmp.ne.s32.totalorder %s66, %s80
      %p82 = scmp.eq.s32.totalorder %s35, 0
      %p83 = por %p81, %p82
      %s85 = sadd.s32 %s84, 1
      %p88 = scmp.eq.s32.totalorder %s29, 1
      %p89 = scmp.ne.s32.totalorder %s84, %s86
      %p90 = scmp.eq.s32.totalorder %s29, 0
      %p91 = por %p89, %p90
      %p92 = scmp.ne.s32.totalorder %s84, %s86
      %p93 = scmp.eq.s32.totalorder %s34, 1
      %p94 = por %p92, %p93
      %p95 = scmp.ne.s32.totalorder %s86, %s87
      %p96 = scmp.eq.s32.totalorder %s34, 0
      %p97 = por %p95, %p96
      %p98 = scmp.ne.s32.totalorder %s86, %s87
      %p99 = scmp.eq.s32.totalorder %s35, 1
      %p100 = por %p98, %p99
      %p102 = scmp.ne.s32.totalorder %s87, %s101
      %p103 = scmp.eq.s32.totalorder %s35, 0
      %p104 = por %p102, %p103
      %s106 = sadd.s32 %s105, 1
      %p109 = scmp.eq.s32.totalorder %s29, 1
      %p110 = scmp.ne.s32.totalorder %s105, %s107
      %p111 = scmp.eq.s32.totalorder %s29, 0
      %p112 = por %p110, %p111
      %p113 = scmp.ne.s32.totalorder %s105, %s107
      %p114 = scmp.eq.s32.totalorder %s34, 1
      %p115 = por %p113, %p114
      %p116 = scmp.ne.s32.totalorder %s107, %s108
      %p117 = scmp.eq.s32.totalorder %s34, 0
      %p118 = por %p116, %p117
      %p119 = scmp.ne.s32.totalorder %s107, %s108
      %p120 = scmp.eq.s32.totalorder %s35, 1
      %p121 = por %p119, %p120
      %p123 = scmp.ne.s32.totalorder %s108, %s122
      %p124 = scmp.eq.s32.totalorder %s35, 0
      %p125 = por %p123, %p124
      %s127 = sadd.s32 %s126, 1
      %p130 = scmp.eq.s32.totalorder %s29, 1
      %p131 = scmp.ne.s32.totalorder %s126, %s128
      %p132 = scmp.eq.s32.totalorder %s29, 0
      %p133 = por %p131, %p132
      %p134 = scmp.ne.s32.totalorder %s126, %s128
      %p135 = scmp.eq.s32.totalorder %s34, 1
      %p136 = por %p134, %p135
      %p137 = scmp.ne.s32.totalorder %s128, %s129
      %p138 = scmp.eq.s32.totalorder %s34, 0
      %p139 = por %p137, %p138
      %p140 = scmp.ne.s32.totalorder %s128, %s129
      %p141 = scmp.eq.s32.totalorder %s35, 1
      %p142 = por %p140, %p141
      %p144 = scmp.ne.s32.totalorder %s129, %s143
      %p145 = scmp.eq.s32.totalorder %s35, 0
      %p146 = por %p144, %p145
      %s148 = sadd.s32 %s147, 1
      %p151 = scmp.eq.s32.totalorder %s29, 1
      %p152 = scmp.ne.s32.totalorder %s147, %s149
      %p153 = scmp.eq.s32.totalorder %s29, 0
      %p154 = por %p152, %p153
      %p155 = scmp.ne.s32.totalorder %s147, %s149
      %p156 = scmp.eq.s32.totalorder %s34, 1
      %p157 = por %p155, %p156
      %p158 = scmp.ne.s32.totalorder %s149, %s150
      %p159 = scmp.eq.s32.totalorder %s34, 0
      %p160 = por %p158, %p159
      %p161 = scmp.ne.s32.totalorder %s149, %s150
      %p162 = scmp.eq.s32.totalorder %s35, 1
      %p163 = por %p161, %p162
      %p165 = scmp.ne.s32.totalorder %s150, %s164
      %p166 = scmp.eq.s32.totalorder %s35, 0
      %p167 = por %p165, %p166
      %s169 = sadd.s32 %s168, 1
      %p172 = scmp.eq.s32.totalorder %s29, 1
      %p173 = scmp.ne.s32.totalorder %s168, %s170
      %p174 = scmp.eq.s32.totalorder %s29, 0
      %p175 = por %p173, %p174
      %p176 = scmp.ne.s32.totalorder %s168, %s170
      %p177 = scmp.eq.s32.totalorder %s34, 1
      %p178 = por %p176, %p177
      %p179 = scmp.ne.s32.totalorder %s170, %s171
      %p180 = scmp.eq.s32.totalorder %s34, 0
      %p181 = por %p179, %p180
      %p182 = scmp.ne.s32.totalorder %s170, %s171
      %p183 = scmp.eq.s32.totalorder %s35, 1
      %p184 = por %p182, %p183
      %p186 = scmp.ne.s32.totalorder %s171, %s185
      %p187 = scmp.eq.s32.totalorder %s35, 0
      %p188 = por %p186, %p187
      %s190 = sadd.s32 %s189, 1
      %p193 = scmp.eq.s32.totalorder %s29, 1
      %p194 = scmp.ne.s32.totalorder %s189, %s191
      %p195 = scmp.eq.s32.totalorder %s29, 0
      %p196 = por %p194, %p195
      %p197 = scmp.ne.s32.totalorder %s189, %s191
      %p198 = scmp.eq.s32.totalorder %s34, 1
      %p199 = por %p197, %p198
      %p200 = scmp.ne.s32.totalorder %s191, %s192
      %p201 = scmp.eq.s32.totalorder %s34, 0
      %p202 = por %p200, %p201
      %p203 = scmp.ne.s32.totalorder %s191, %s192
      %p204 = scmp.eq.s32.totalorder %s35, 1
      %p205 = por %p203, %p204
      %p207 = scmp.ne.s32.totalorder %s192, %s206
      %p208 = scmp.eq.s32.totalorder %s35, 0
      %p209 = por %p207, %p208
      %s211 = sadd.s32 %s210, 1
      %p214 = scmp.eq.s32.totalorder %s29, 1
      %p215 = scmp.ne.s32.totalorder %s210, %s212
      %p216 = scmp.eq.s32.totalorder %s29, 0
      %p217 = por %p215, %p216
      %p218 = scmp.ne.s32.totalorder %s210, %s212
      %p219 = scmp.eq.s32.totalorder %s34, 1
      %p220 = por %p218, %p219
      %p221 = scmp.ne.s32.totalorder %s212, %s213
      %p222 = scmp.eq.s32.totalorder %s34, 0
      %p223 = por %p221, %p222
      %p224 = scmp.ne.s32.totalorder %s212, %s213
      %p225 = scmp.eq.s32.totalorder %s35, 1
      %p226 = por %p224, %p225
      %p228 = scmp.ne.s32.totalorder %s213, %s227
      %p229 = scmp.eq.s32.totalorder %s35, 0
      %p230 = por %p228, %p229
      %s232 = sadd.s32 %s231, 1
      %p235 = scmp.eq.s32.totalorder %s29, 1
      %p236 = scmp.ne.s32.totalorder %s231, %s233
      %p237 = scmp.eq.s32.totalorder %s29, 0
      %p238 = por %p236, %p237
      %p239 = scmp.ne.s32.totalorder %s231, %s233
      %p240 = scmp.eq.s32.totalorder %s34, 1
      %p241 = por %p239, %p240
      %p242 = scmp.ne.s32.totalorder %s233, %s234
      %p243 = scmp.eq.s32.totalorder %s34, 0
      %p244 = por %p242, %p243
      %p245 = scmp.ne.s32.totalorder %s233, %s234
      %p246 = scmp.eq.s32.totalorder %s35, 1
      %p247 = por %p245, %p246
      %p249 = scmp.ne.s32.totalorder %s234, %s248
      %p250 = scmp.eq.s32.totalorder %s35, 0
      %p251 = por %p249, %p250
      %s253 = sadd.s32 %s252, 1
      %p256 = scmp.eq.s32.totalorder %s29, 1
      %p257 = scmp.ne.s32.totalorder %s252, %s254
      %p258 = scmp.eq.s32.totalorder %s29, 0
      %p259 = por %p257, %p258
      %p260 = scmp.ne.s32.totalorder %s252, %s254
      %p261 = scmp.eq.s32.totalorder %s34, 1
      %p262 = por %p260, %p261
      %p263 = scmp.ne.s32.totalorder %s254, %s255
      %p264 = scmp.eq.s32.totalorder %s34, 0
      %p265 = por %p263, %p264
      %p266 = scmp.ne.s32.totalorder %s254, %s255
      %p267 = scmp.eq.s32.totalorder %s35, 1
      %p268 = por %p266, %p267
      %p270 = scmp.ne.s32.totalorder %s255, %s269
      %p271 = scmp.eq.s32.totalorder %s35, 0
      %p272 = por %p270, %p271
      %s274 = sadd.s32 %s273, 1
      %p277 = scmp.eq.s32.totalorder %s29, 1
      %p278 = scmp.ne.s32.totalorder %s273, %s275
      %p279 = scmp.eq.s32.totalorder %s29, 0
      %p280 = por %p278, %p279
      %p281 = scmp.ne.s32.totalorder %s273, %s275
      %p282 = scmp.eq.s32.totalorder %s34, 1
      %p283 = por %p281, %p282
      %p284 = scmp.ne.s32.totalorder %s275, %s276
      %p285 = scmp.eq.s32.totalorder %s34, 0
      %p286 = por %p284, %p285
      %p287 = scmp.ne.s32.totalorder %s275, %s276
      %p288 = scmp.eq.s32.totalorder %s35, 1
      %p289 = por %p287, %p288
      %p291 = scmp.ne.s32.totalorder %s276, %s290
      %p292 = scmp.eq.s32.totalorder %s35, 0
      %p293 = por %p291, %p292
      %s295 = sadd.s32 %s294, 1
      %p298 = scmp.eq.s32.totalorder %s29, 1
      %p299 = scmp.ne.s32.totalorder %s294, %s296
      %p300 = scmp.eq.s32.totalorder %s29, 0
      %p301 = por %p299, %p300
      %p302 = scmp.ne.s32.totalorder %s294, %s296
      %p303 = scmp.eq.s32.totalorder %s34, 1
      %p304 = por %p302, %p303
      %p305 = scmp.ne.s32.totalorder %s296, %s297
      %p306 = scmp.eq.s32.totalorder %s34, 0
      %p307 = por %p305, %p306
      %p308 = scmp.ne.s32.totalorder %s296, %s297
      %p309 = scmp.eq.s32.totalorder %s35, 1
      %p310 = por %p308, %p309
      %p312 = scmp.ne.s32.totalorder %s297, %s311
      %p313 = scmp.eq.s32.totalorder %s35, 0
      %p314 = por %p312, %p313
      %s315 = ssub.s32 %s29, %s36
      %p316 = scmp.eq.s32.totalorder %s315, 0
      %s318 = sadd.s32 %s317, 1
      %s319 = scalar_select %p316, %s317, %s318
      %p322 = pneg %p316
      %p323 = scmp.eq.s32.totalorder %s29, 1
      %p324 = por %p322, %p323
      %p325 = scmp.ne.s32.totalorder %s317, %s320
      %p326 = scmp.eq.s32.totalorder %s29, 0
      %p327 = por %p325, %p326
      %p328 = scmp.ne.s32.totalorder %s317, %s320
      %p329 = scmp.eq.s32.totalorder %s34, 1
      %p330 = por %p328, %p329
      %p331 = scmp.ne.s32.totalorder %s320, %s321
      %p332 = scmp.eq.s32.totalorder %s34, 0
      %p333 = por %p331, %p332
      %p334 = scmp.ne.s32.totalorder %s320, %s321
      %p335 = scmp.eq.s32.totalorder %s35, 1
      %p336 = por %p334, %p335
      %p338 = scmp.ne.s32.totalorder %s321, %s337
      %p339 = scmp.eq.s32.totalorder %s35, 0
      %p340 = por %p338, %p339
      %p341 = scmp.le.s32.totalorder 1, %s29
      %p342 = scmp.lt.s32.totalorder %s29, 3
      %p343 = pnand %p341, %p342
      %p344 = pneg %p343
      // Predicated region
      $region9: #{tpu_custom_call.1} parent=5 // pred_check
        _
      $region10: #{tpu_custom_call.1} parent=5 // pred_check_branch
        %346 = sbr.rel (%p343) target = $region12
      $region11: #{tpu_custom_call.1} parent=5 // pred_region
        %s347 = ssub.s32 %s29, 1
        // Predicated region
        $region13: #{tpu_custom_call.1} parent=11 // pred_check
          %p348 = pneg %p76
        $region14: #{tpu_custom_call.1} parent=11 // pred_check_branch
          %350 = sbr.rel (%p348) target = $region16
        $region15: #{tpu_custom_call.1} parent=11 // pred_region
          _
        $region16: #{tpu_custom_call.1} parent=11 // pred_fallthru
          _
        // Predicated region
        $region17: #{tpu_custom_call.1} parent=11 // pred_check
          %p351 = pneg %p97
        $region18: #{tpu_custom_call.1} parent=11 // pred_check_branch
          %353 = sbr.rel (%p351) target = $region20
        $region19: #{tpu_custom_call.1} parent=11 // pred_region
          _
        $region20: #{tpu_custom_call.1} parent=11 // pred_fallthru
          _
        // Predicated region
        $region21: #{tpu_custom_call.1} parent=11 // pred_check
          %p354 = pneg %p118
        $region22: #{tpu_custom_call.1} parent=11 // pred_check_branch
          %356 = sbr.rel (%p354) target = $region24
        $region23: #{tpu_custom_call.1} parent=11 // pred_region
          _
        $region24: #{tpu_custom_call.1} parent=11 // pred_fallthru
          _
        // Predicated region
        $region25: #{tpu_custom_call.1} parent=11 // pred_check
          %p357 = pneg %p139
        $region26: #{tpu_custom_call.1} parent=11 // pred_check_branch
          %359 = sbr.rel (%p357) target = $region28
        $region27: #{tpu_custom_call.1} parent=11 // pred_region
          _
        $region28: #{tpu_custom_call.1} parent=11 // pred_fallthru
          _
        // Predicated region
        $region29: #{tpu_custom_call.1} parent=11 // pred_check
          %p360 = pneg %p160
        $region30: #{tpu_custom_call.1} parent=11 // pred_check_branch
          %362 = sbr.rel (%p360) target = $region32
        $region31: #{tpu_custom_call.1} parent=11 // pred_region
          _
        $region32: #{tpu_custom_call.1} parent=11 // pred_fallthru
          _
        // Predicated region
        $region33: #{tpu_custom_call.1} parent=11 // pred_check
          %p363 = pneg %p181
        $region34: #{tpu_custom_call.1} parent=11 // pred_check_branch
          %365 = sbr.rel (%p363) target = $region36
        $region35: #{tpu_custom_call.1} parent=11 // pred_region
          _
        $region36: #{tpu_custom_call.1} parent=11 // pred_fallthru
          _
        // Predicated region
        $region37: #{tpu_custom_call.1} parent=11 // pred_check
          %p366 = pneg %p202
        $region38: #{tpu_custom_call.1} parent=11 // pred_check_branch
          %368 = sbr.rel (%p366) target = $region40
        $region39: #{tpu_custom_call.1} parent=11 // pred_region
          _
        $region40: #{tpu_custom_call.1} parent=11 // pred_fallthru
          _
        // Predicated region
        $region41: #{tpu_custom_call.1} parent=11 // pred_check
          %p369 = pneg %p223
        $region42: #{tpu_custom_call.1} parent=11 // pred_check_branch
          %371 = sbr.rel (%p369) target = $region44
        $region43: #{tpu_custom_call.1} parent=11 // pred_region
          _
        $region44: #{tpu_custom_call.1} parent=11 // pred_fallthru
          _
        // Predicated region
        $region45: #{tpu_custom_call.1} parent=11 // pred_check
          %p372 = pneg %p244
        $region46: #{tpu_custom_call.1} parent=11 // pred_check_branch
          %374 = sbr.rel (%p372) target = $region48
        $region47: #{tpu_custom_call.1} parent=11 // pred_region
          _
        $region48: #{tpu_custom_call.1} parent=11 // pred_fallthru
          _
        // Predicated region
        $region49: #{tpu_custom_call.1} parent=11 // pred_check
          %p375 = pneg %p265
        $region50: #{tpu_custom_call.1} parent=11 // pred_check_branch
          %377 = sbr.rel (%p375) target = $region52
        $region51: #{tpu_custom_call.1} parent=11 // pred_region
          _
        $region52: #{tpu_custom_call.1} parent=11 // pred_fallthru
          _
        // Predicated region
        $region53: #{tpu_custom_call.1} parent=11 // pred_check
          %p378 = pneg %p286
        $region54: #{tpu_custom_call.1} parent=11 // pred_check_branch
          %380 = sbr.rel (%p378) target = $region56
        $region55: #{tpu_custom_call.1} parent=11 // pred_region
          _
        $region56: #{tpu_custom_call.1} parent=11 // pred_fallthru
          _
        // Predicated region
        $region57: #{tpu_custom_call.1} parent=11 // pred_check
          %p381 = pneg %p307
        $region58: #{tpu_custom_call.1} parent=11 // pred_check_branch
          %383 = sbr.rel (%p381) target = $region60
        $region59: #{tpu_custom_call.1} parent=11 // pred_region
          _
        $region60: #{tpu_custom_call.1} parent=11 // pred_fallthru
          _
      $region12: #{tpu_custom_call.1} parent=5 // pred_fallthru
        _
      %p384 = scmp.lt.s32.totalorder %s29, 2
      // Predicated region
      $region61: #{tpu_custom_call.1} parent=5 // pred_check
        %p385 = pneg %p384
      $region62: #{tpu_custom_call.1} parent=5 // pred_check_branch
        %387 = sbr.rel (%p385) target = $region64
      $region63: #{tpu_custom_call.1} parent=5 // pred_region
        // Predicated region
        $region65: #{tpu_custom_call.1} parent=63 // pred_check
          %p388 = pneg %p49
        $region66: #{tpu_custom_call.1} parent=63 // pred_check_branch
          %390 = sbr.rel (%p388) target = $region68
        $region67: #{tpu_custom_call.1} parent=63 // pred_region
          %p391 = scmp.lt.s32.totalorder %s29, 1
          %s392 = scalar_select %p391, %s29, 1
          %s393 = smul.addr %s392, 8
          %s394 = scalar_lea.vmem %s1, %s393
        $region68: #{tpu_custom_call.1} parent=63 // pred_fallthru
          _
      $region64: #{tpu_custom_call.1} parent=5 // pred_fallthru
        _
      %p395 = scmp.le.s32.totalorder 1, %s29
      %p396 = scmp.lt.s32.totalorder %s29, 3
      %p397 = pnand %p395, %p396
      %p398 = pneg %p397
      // Predicated region
      $region69: #{tpu_custom_call.1} parent=5 // pred_check
        _
      $region70: #{tpu_custom_call.1} parent=5 // pred_check_branch
        %400 = sbr.rel (%p397) target = $region72
      $region71: #{tpu_custom_call.1} parent=5 // pred_region
        %s401 = ssub.s32 %s29, 1
        %p402 = scmp.lt.s32.totalorder %s34, 1
        %s403 = scalar_select %p402, %s34, 1
        %s404 = smul.addr %s403, 8
        %s405 = scalar_lea.vmem %s1, %s404
        %p406 = pneg %p55
        %p407 = pneg %p52
        %p408 = pneg %p76
        %p409 = pneg %p73
        %p410 = pneg %p97
        %p411 = pneg %p94
        %p412 = pneg %p118
        %p413 = pneg %p115
        %p414 = pneg %p139
        %p415 = pneg %p136
        %p416 = pneg %p160
        %p417 = pneg %p157
        %p418 = pneg %p181
        %p419 = pneg %p178
        %p420 = pneg %p202
        %p421 = pneg %p199
        %p422 = pneg %p223
        %p423 = pneg %p220
        %p424 = pneg %p244
        %p425 = pneg %p241
        %p426 = pneg %p265
        %p427 = pneg %p262
        %p428 = pneg %p286
        %p429 = pneg %p283
        %p430 = pneg %p307
        %p431 = pneg %p304
        %p432 = pneg %p333
        %p433 = pneg %p330
        %s434 = sand.u32 %s320, 1
        %s435 = scalar_lea.sflag [#allocation5], %s434
        %s436 = sand.u32 %s320, 1
        %s437 = smul.addr %s436, 8
        %s438 = scalar_lea.vmem [#allocation4], %s437
        %p439 = scmp.lt.s32.totalorder %s34, 1
        %s440 = scalar_select %p439, %s34, 1
        %s441 = smul.addr %s440, 8
        %s442 = scalar_lea.vmem %s1, %s441
        %v444 = vld [vmem:[%s442] sm:$0xff]
        %v445 = vpack.c.bf16 %v444, %v444
        %v446 = vld [vmem:[%s2] sm:$0xff]
        %v447 = vld [vmem:[%s2 + $0x8] sm:$0xff]
        %v448 = vld [vmem:[%s2 + $0x10] sm:$0xff]
        %v449 = vld [vmem:[%s2 + $0x18] sm:$0xff]
        %v450 = vld [vmem:[%s3] sm:$0x3]
        %v452 = vlaneseq
        %v453 = vshrl.u32 %v452, 7
        %v454 = vsub.s32 0, %v453
        %v455 = vrot.slane %v450, %v454
        %v456 = vlaneseq
        %v457 = vshrl.u32 %v456, 7
        %v458 = vsub.s32 1, %v457
        %v459 = vrot.slane %v450, %v458
        %v466 = vunpack.c.l.b16 %v446
        %v467 = vunpack.c.h.b16 %v446
        %v468 = vunpack.c.l.b16 %v447
        %v469 = vunpack.c.h.b16 %v447
        %v470 = vunpack.c.l.b16 %v448
        %v471 = vunpack.c.h.b16 %v448
        %v472 = vunpack.c.l.b16 %v449
        %v473 = vunpack.c.h.b16 %v449
        %v474 = vpack.c.b16 %v468, %v466
        %v475 = vpack.c.b16 %v469, %v467
        %v476 = vpack.c.b16 %v472, %v470
        %v477 = vpack.c.b16 %v473, %v471
        %vm482 = vcmask 261120
        %v484 = vsel %vm482, %v445, 0
        %486 = vmatprep.subr.bf16.mxu0 0
        %487 = vmatpush1.bf16.msra.mxu0 0
        %488 = vmatprep.subr.bf16.mxu0 0
        %489 = vmatpush1.bf16.msra.mxu0 0
        %490 = vmatprep.subr.bf16.mxu0 0
        %491 = vmatpush1.bf16.msra.mxu0 0
        %492 = vmatprep.subr.bf16.mxu0 0
        %493 = vmatpush1.bf16.msra.mxu0 0
        %494 = vmatprep.subr.bf16.mxu0 0
        %495 = vmatpush1.bf16.msra.mxu0 0
        %496 = vmatprep.subr.bf16.mxu0 0
        %497 = vmatpush1.bf16.msra.mxu0 0
        %498 = vmatprep.subr.bf16.mxu0 %v477
        %499 = vmatpush1.bf16.msra.mxu0 %v476
        %500 = vmatprep.subr.bf16.mxu0 %v475
        %501 = vmatpush1.bf16.msra.mxu0 %v474
        %502 = vmatprep.subr.bf16.mxu0 0
        %503 = vmatpush2.bf16.msra.mxu0 0
        %504 = vmatprep.subr.bf16.mxu0 0
        %505 = vmatpush2.bf16.msra.mxu0 0
        %506 = vmatprep.subr.bf16.mxu0 0
        %507 = vmatpush2.bf16.msra.mxu0 0
        %508 = vmatprep.subr.bf16.mxu0 0
        %509 = vmatpush2.bf16.msra.mxu0 0
        %510 = vmatprep.subr.bf16.mxu0 0
        %511 = vmatpush2.bf16.msra.mxu0 0
        %512 = vmatprep.subr.bf16.mxu0 0
        %513 = vmatpush2.bf16.msra.mxu0 0
        %514 = vmatprep.subr.bf16.mxu0 0
        %515 = vmatpush2.bf16.msra.mxu0 0
        %516 = vmatprep.subr.bf16.mxu0 0
        %517 = vmatpush2.bf16.msra.mxu0 0
        %518 = vmatprep.mubr.bf16.mxu0 0
        %519 = vmatmul.mubr.bf16.gmra.mxu0 %v484
        %v520 = vpop.f32.mrf.mxu0
        %v521 = vadd.f32 %v455, %v520
        %v522 = vpop.f32.mrf.mxu0
        %v523 = vadd.f32 %v459, %v522
        %v524 = vpop.f32.mrf.mxu0
        %v525 = vpop.f32.mrf.mxu0
        %526 = vdwg.mxu0
        %v527 = vpack.c.bf16 %v521, %v521
        %v528 = vpack.c.bf16 %v523, %v523
        %v529 = vlaneseq
        %v530 = vand.u32 %v529, 127
        %s531 = sld [smem:[#allocation3 + %s34]]
        %v532 = vstv %s531
        %vm533 = vcmp.ge.s32.totalorder %v530, %v532
        %535 = vrot.lane.b32.xlu0 %v527, 64
        %v536 = vpop.permute.xlu0 %535
        %vm537 = vcmask 130048
        %v539 = vsel %vm537, %v527, 0
        %v542 = vsel %vm537, %v536, 0
        %544 = vmatprep.subr.bf16.mxu0 0
        %545 = vmatpush1.bf16.xpose.msra.mxu0 0
        %546 = vmatprep.subr.bf16.mxu0 0
        %547 = vmatpush1.bf16.xpose.msra.mxu0 0
        %548 = vmatprep.subr.bf16.mxu0 0
        %549 = vmatpush1.bf16.xpose.msra.mxu0 0
        %550 = vmatprep.subr.bf16.mxu0 0
        %551 = vmatpush1.bf16.xpose.msra.mxu0 0
        %552 = vmatprep.subr.bf16.mxu0 0
        %553 = vmatpush1.bf16.xpose.msra.mxu0 0
        %554 = vmatprep.subr.bf16.mxu0 0
        %555 = vmatpush1.bf16.xpose.msra.mxu0 0
        %556 = vmatprep.subr.bf16.mxu0 0
        %557 = vmatpush1.bf16.xpose.msra.mxu0 0
        %558 = vmatprep.subr.bf16.mxu0 0
        %559 = vmatpush1.bf16.xpose.msra.mxu0 %v542
        %560 = vmatprep.subr.bf16.mxu0 0
        %561 = vmatpush2.bf16.xpose.msra.mxu0 0
        %562 = vmatprep.subr.bf16.mxu0 0
        %563 = vmatpush2.bf16.xpose.msra.mxu0 0
        %564 = vmatprep.subr.bf16.mxu0 0
        %565 = vmatpush2.bf16.xpose.msra.mxu0 0
        %566 = vmatprep.subr.bf16.mxu0 0
        %567 = vmatpush2.bf16.xpose.msra.mxu0 0
        %568 = vmatprep.subr.bf16.mxu0 0
        %569 = vmatpush2.bf16.xpose.msra.mxu0 0
        %570 = vmatprep.subr.bf16.mxu0 0
        %571 = vmatpush2.bf16.xpose.msra.mxu0 0
        %572 = vmatprep.subr.bf16.mxu0 0
        %573 = vmatpush2.bf16.xpose.msra.mxu0 0
        %574 = vmatprep.subr.bf16.mxu0 0
        %575 = vmatpush2.bf16.xpose.msra.mxu0 0
        %576 = vmatprep.mubr.bf16.mxu0 0
        %577 = vmatmul.mubr.bf16.gmra.mxu0 %v539
        %v578 = vpop.f32.mrf.mxu0
        %v579 = vadd.f32 0.0, %v578
        %v580 = vpop.f32.mrf.mxu0
        %v581 = vpop.f32.mrf.mxu0
        %v582 = vpop.f32.mrf.mxu0
        %583 = vdwg.mxu0
        %v584 = vsel %vm533, 1, 0
        %vm585 = vcmp.eq.s32.totalorder %v584, 1
        %v586 = vsel %vm585, -1e+09, %v579
        %vm587 = vcmask 64512
        %v588 = vsel %vm587, %v586, -inf
        %589 = vmax.xlane.f32.xlu0 %v588
        %v590 = vpop.xlane.xlu0 %589
        %v591 = vsub.f32 %v586, %v590
        %v592 = vmul.f32 %v591, 1.442695
        %v593 = vpow.pop %v592
        %v594 = vsel %vm587, %v593, 0.0
        %595 = vadd.xlane.f32.xlu0 %v594
        %v596 = vpop.xlane.xlu0 %595
        %v597 = vrcp.pop %v596
        %v598 = vmul.f32 %v593, %v597
        %v599 = vpack.c.bf16 %v598, %v598
        %v601 = vsel %vm587, %v599, 0
        %vm603 = vcmask 1043456
        %v605 = vsel %vm603, %v528, 0
        %607 = vmatprep.subr.bf16.mxu0 0
        %608 = vmatpush1.bf16.msra.mxu0 0
        %609 = vmatprep.subr.bf16.mxu0 0
        %610 = vmatpush1.bf16.msra.mxu0 0
        %611 = vmatprep.subr.bf16.mxu0 0
        %612 = vmatpush1.bf16.msra.mxu0 0
        %613 = vmatprep.subr.bf16.mxu0 0
        %614 = vmatpush1.bf16.msra.mxu0 0
        %615 = vmatprep.subr.bf16.mxu0 0
        %616 = vmatpush1.bf16.msra.mxu0 0
        %617 = vmatprep.subr.bf16.mxu0 0
        %618 = vmatpush1.bf16.msra.mxu0 0
        %619 = vmatprep.subr.bf16.mxu0 0
        %620 = vmatpush1.bf16.msra.mxu0 0
        %621 = vmatprep.subr.bf16.mxu0 0
        %622 = vmatpush1.bf16.msra.mxu0 %v605
        %623 = vmatprep.subr.bf16.mxu0 0
        %624 = vmatpush2.bf16.msra.mxu0 0
        %625 = vmatprep.subr.bf16.mxu0 0
        %626 = vmatpush2.bf16.msra.mxu0 0
        %627 = vmatprep.subr.bf16.mxu0 0
        %628 = vmatpush2.bf16.msra.mxu0 0
        %629 = vmatprep.subr.bf16.mxu0 0
        %630 = vmatpush2.bf16.msra.mxu0 0
        %631 = vmatprep.subr.bf16.mxu0 0
        %632 = vmatpush2.bf16.msra.mxu0 0
        %633 = vmatprep.subr.bf16.mxu0 0
        %634 = vmatpush2.bf16.msra.mxu0 0
        %635 = vmatprep.subr.bf16.mxu0 0
        %636 = vmatpush2.bf16.msra.mxu0 0
        %637 = vmatprep.subr.bf16.mxu0 0
        %638 = vmatpush2.bf16.msra.mxu0 0
        %639 = vmatprep.mubr.bf16.mxu0 0
        %640 = vmatmul.mubr.bf16.gmra.mxu0 %v601
        %v641 = vpop.f32.mrf.mxu0
        %v642 = vadd.f32 0.0, %v641
        %v643 = vpop.f32.mrf.mxu0
        %v644 = vpop.f32.mrf.mxu0
        %v645 = vpop.f32.mrf.mxu0
        %646 = vdwg.mxu0
        %v647 = vpack.c.bf16 %v642, %v642
        %v648 = vld [vmem:[%s4] sm:$0xf]
        %v649 = vld [vmem:[%s4 + $0x4] sm:$0xf]
        %650 = vrot.lane.b32.xlu0 %v527, 112
        %v651 = vpop.permute.xlu0 %650
        %652 = vrot.lane.b32.xlu0 %v527, 48
        %v653 = vpop.permute.xlu0 %652
        %v655 = vsel %vm537, %v651, 0
        %v658 = vsel %vm537, %v653, 0
        %660 = vmatprep.subr.bf16.mxu0 0
        %661 = vmatpush1.bf16.xpose.msra.mxu0 0
        %662 = vmatprep.subr.bf16.mxu0 0
        %663 = vmatpush1.bf16.xpose.msra.mxu0 0
        %664 = vmatprep.subr.bf16.mxu0 0
        %665 = vmatpush1.bf16.xpose.msra.mxu0 0
        %666 = vmatprep.subr.bf16.mxu0 0
        %667 = vmatpush1.bf16.xpose.msra.mxu0 0
        %668 = vmatprep.subr.bf16.mxu0 0
        %669 = vmatpush1.bf16.xpose.msra.mxu0 0
        %670 = vmatprep.subr.bf16.mxu0 0
        %671 = vmatpush1.bf16.xpose.msra.mxu0 0
        %672 = vmatprep.subr.bf16.mxu0 0
        %673 = vmatpush1.bf16.xpose.msra.mxu0 0
        %674 = vmatprep.subr.bf16.mxu0 0
        %675 = vmatpush1.bf16.xpose.msra.mxu0 %v658
        %676 = vmatprep.subr.bf16.mxu0 0
        %677 = vmatpush2.bf16.xpose.msra.mxu0 0
        %678 = vmatprep.subr.bf16.mxu0 0
        %679 = vmatpush2.bf16.xpose.msra.mxu0 0
        %680 = vmatprep.subr.bf16.mxu0 0
        %681 = vmatpush2.bf16.xpose.msra.mxu0 0
        %682 = vmatprep.subr.bf16.mxu0 0
        %683 = vmatpush2.bf16.xpose.msra.mxu0 0
        %684 = vmatprep.subr.bf16.mxu0 0
        %685 = vmatpush2.bf16.xpose.msra.mxu0 0
        %686 = vmatprep.subr.bf16.mxu0 0
        %687 = vmatpush2.bf16.xpose.msra.mxu0 0
        %688 = vmatprep.subr.bf16.mxu0 0
        %689 = vmatpush2.bf16.xpose.msra.mxu0 0
        %690 = vmatprep.subr.bf16.mxu0 0
        %691 = vmatpush2.bf16.xpose.msra.mxu0 0
        %692 = vmatprep.mubr.bf16.mxu0 0
        %693 = vmatmul.mubr.bf16.gmra.mxu0 %v655
        %v694 = vpop.f32.mrf.mxu0
        %v695 = vadd.f32 0.0, %v694
        %v696 = vpop.f32.mrf.mxu0
        %v697 = vpop.f32.mrf.mxu0
        %v698 = vpop.f32.mrf.mxu0
        %699 = vdwg.mxu0
        %v700 = vsel %vm585, -1e+09, %v695
        %v701 = vsel %vm587, %v700, -inf
        %702 = vmax.xlane.f32.xlu0 %v701
        %v703 = vpop.xlane.xlu0 %702
        %v704 = vsub.f32 %v700, %v703
        %v705 = vmul.f32 %v704, 1.442695
        %v706 = vpow.pop %v705
        %v707 = vsel %vm587, %v706, 0.0
        %708 = vadd.xlane.f32.xlu0 %v707
        %v709 = vpop.xlane.xlu0 %708
        %v710 = vrcp.pop %v709
        %v711 = vmul.f32 %v706, %v710
        %v712 = vpack.c.bf16 %v711, %v711
        %714 = vrot.lane.b32.xlu0 %v528, 112
        %v715 = vpop.permute.xlu0 %714
        %v717 = vsel %vm587, %v712, 0
        %v720 = vsel %vm603, %v715, 0
        %722 = vmatprep.subr.bf16.mxu0 0
        %723 = vmatpush1.bf16.msra.mxu0 0
        %724 = vmatprep.subr.bf16.mxu0 0
        %725 = vmatpush1.bf16.msra.mxu0 0
        %726 = vmatprep.subr.bf16.mxu0 0
        %727 = vmatpush1.bf16.msra.mxu0 0
        %728 = vmatprep.subr.bf16.mxu0 0
        %729 = vmatpush1.bf16.msra.mxu0 0
        %730 = vmatprep.subr.bf16.mxu0 0
        %731 = vmatpush1.bf16.msra.mxu0 0
        %732 = vmatprep.subr.bf16.mxu0 0
        %733 = vmatpush1.bf16.msra.mxu0 0
        %734 = vmatprep.subr.bf16.mxu0 0
        %735 = vmatpush1.bf16.msra.mxu0 0
        %736 = vmatprep.subr.bf16.mxu0 0
        %737 = vmatpush1.bf16.msra.mxu0 %v720
        %738 = vmatprep.subr.bf16.mxu0 0
        %739 = vmatpush2.bf16.msra.mxu0 0
        %740 = vmatprep.subr.bf16.mxu0 0
        %741 = vmatpush2.bf16.msra.mxu0 0
        %742 = vmatprep.subr.bf16.mxu0 0
        %743 = vmatpush2.bf16.msra.mxu0 0
        %744 = vmatprep.subr.bf16.mxu0 0
        %745 = vmatpush2.bf16.msra.mxu0 0
        %746 = vmatprep.subr.bf16.mxu0 0
        %747 = vmatpush2.bf16.msra.mxu0 0
        %748 = vmatprep.subr.bf16.mxu0 0
        %749 = vmatpush2.bf16.msra.mxu0 0
        %750 = vmatprep.subr.bf16.mxu0 0
        %751 = vmatpush2.bf16.msra.mxu0 0
        %752 = vmatprep.subr.bf16.mxu0 0
        %753 = vmatpush2.bf16.msra.mxu0 0
        %754 = vmatprep.mubr.bf16.mxu0 0
        %755 = vmatmul.mubr.bf16.gmra.mxu0 %v717
        %v756 = vpop.f32.mrf.mxu0
        %v757 = vadd.f32 0.0, %v756
        %v758 = vpop.f32.mrf.mxu0
        %v759 = vpop.f32.mrf.mxu0
        %v760 = vpop.f32.mrf.mxu0
        %761 = vdwg.mxu0
        %v762 = vpack.c.bf16 %v757, %v757
        %v763 = vld [vmem:[%s4 + $0x8] sm:$0xf]
        %v764 = vld [vmem:[%s4 + $0xc] sm:$0xf]
        %v767 = vunpack.c.l.b16 %v763
        %v768 = vunpack.c.l.b16 %v764
        %v769 = vpack.c.b16 %v768, %v767
        %v772 = vsel %vm537, %v762, 0
        %774 = vmatprep.subr.bf16.mxu0 0
        %775 = vmatpush1.bf16.msra.mxu0 0
        %776 = vmatprep.subr.bf16.mxu0 0
        %777 = vmatpush1.bf16.msra.mxu0 0
        %778 = vmatprep.subr.bf16.mxu0 0
        %779 = vmatpush1.bf16.msra.mxu0 0
        %780 = vmatprep.subr.bf16.mxu0 0
        %781 = vmatpush1.bf16.msra.mxu0 0
        %782 = vmatprep.subr.bf16.mxu0 0
        %783 = vmatpush1.bf16.msra.mxu0 0
        %784 = vmatprep.subr.bf16.mxu0 0
        %785 = vmatpush1.bf16.msra.mxu0 0
        %786 = vmatprep.subr.bf16.mxu0 0
        %787 = vmatpush1.bf16.msra.mxu0 0
        %788 = vmatprep.subr.bf16.mxu0 0
        %789 = vmatpush1.bf16.msra.mxu0 %v769
        %790 = vmatprep.subr.bf16.mxu0 0
        %791 = vmatpush2.bf16.msra.mxu0 0
        %792 = vmatprep.subr.bf16.mxu0 0
        %793 = vmatpush2.bf16.msra.mxu0 0
        %794 = vmatprep.subr.bf16.mxu0 0
        %795 = vmatpush2.bf16.msra.mxu0 0
        %796 = vmatprep.subr.bf16.mxu0 0
        %797 = vmatpush2.bf16.msra.mxu0 0
        %798 = vmatprep.subr.bf16.mxu0 0
        %799 = vmatpush2.bf16.msra.mxu0 0
        %800 = vmatprep.subr.bf16.mxu0 0
        %801 = vmatpush2.bf16.msra.mxu0 0
        %802 = vmatprep.subr.bf16.mxu0 0
        %803 = vmatpush2.bf16.msra.mxu0 0
        %804 = vmatprep.subr.bf16.mxu0 0
        %805 = vmatpush2.bf16.msra.mxu0 0
        %806 = vmatprep.mubr.bf16.mxu0 0
        %807 = vmatmul.mubr.bf16.gmra.mxu0 %v772
        %v808 = vpop.f32.mrf.mxu0
        %v809 = vadd.f32 0.0, %v808
        %v810 = vpop.f32.mrf.mxu0
        %v811 = vpop.f32.mrf.mxu0
        %v812 = vpop.f32.mrf.mxu0
        %813 = vdwg.mxu0
        %v816 = vunpack.c.l.b16 %v648
        %v817 = vunpack.c.l.b16 %v649
        %v818 = vpack.c.b16 %v817, %v816
        %v821 = vsel %vm537, %v647, 0
        %823 = vmatprep.subr.bf16.mxu0 0
        %824 = vmatpush1.bf16.msra.mxu0 0
        %825 = vmatprep.subr.bf16.mxu0 0
        %826 = vmatpush1.bf16.msra.mxu0 0
        %827 = vmatprep.subr.bf16.mxu0 0
        %828 = vmatpush1.bf16.msra.mxu0 0
        %829 = vmatprep.subr.bf16.mxu0 0
        %830 = vmatpush1.bf16.msra.mxu0 0
        %831 = vmatprep.subr.bf16.mxu0 0
        %832 = vmatpush1.bf16.msra.mxu0 0
        %833 = vmatprep.subr.bf16.mxu0 0
        %834 = vmatpush1.bf16.msra.mxu0 0
        %835 = vmatprep.subr.bf16.mxu0 0
        %836 = vmatpush1.bf16.msra.mxu0 0
        %837 = vmatprep.subr.bf16.mxu0 0
        %838 = vmatpush1.bf16.msra.mxu0 %v818
        %839 = vmatprep.subr.bf16.mxu0 0
        %840 = vmatpush2.bf16.msra.mxu0 0
        %841 = vmatprep.subr.bf16.mxu0 0
        %842 = vmatpush2.bf16.msra.mxu0 0
        %843 = vmatprep.subr.bf16.mxu0 0
        %844 = vmatpush2.bf16.msra.mxu0 0
        %845 = vmatprep.subr.bf16.mxu0 0
        %846 = vmatpush2.bf16.msra.mxu0 0
        %847 = vmatprep.subr.bf16.mxu0 0
        %848 = vmatpush2.bf16.msra.mxu0 0
        %849 = vmatprep.subr.bf16.mxu0 0
        %850 = vmatpush2.bf16.msra.mxu0 0
        %851 = vmatprep.subr.bf16.mxu0 0
        %852 = vmatpush2.bf16.msra.mxu0 0
        %853 = vmatprep.subr.bf16.mxu0 0
        %854 = vmatpush2.bf16.msra.mxu0 0
        %855 = vmatprep.mubr.bf16.mxu0 0
        %856 = vmatmul.mubr.bf16.gmra.mxu0 %v821
        %v857 = vpop.f32.mrf.mxu0
        %v858 = vadd.f32 %v809, %v857
        %v859 = vpop.f32.mrf.mxu0
        %v860 = vpop.f32.mrf.mxu0
        %v861 = vpop.f32.mrf.mxu0
        %862 = vdwg.mxu0
        %863 = vrot.lane.b32.xlu0 %v527, 96
        %v864 = vpop.permute.xlu0 %863
        %865 = vrot.lane.b32.xlu0 %v527, 32
        %v866 = vpop.permute.xlu0 %865
        %v868 = vsel %vm537, %v864, 0
        %v871 = vsel %vm537, %v866, 0
        %873 = vmatprep.subr.bf16.mxu0 0
        %874 = vmatpush1.bf16.xpose.msra.mxu0 0
        %875 = vmatprep.subr.bf16.mxu0 0
        %876 = vmatpush1.bf16.xpose.msra.mxu0 0
        %877 = vmatprep.subr.bf16.mxu0 0
        %878 = vmatpush1.bf16.xpose.msra.mxu0 0
        %879 = vmatprep.subr.bf16.mxu0 0
        %880 = vmatpush1.bf16.xpose.msra.mxu0 0
        %881 = vmatprep.subr.bf16.mxu0 0
        %882 = vmatpush1.bf16.xpose.msra.mxu0 0
        %883 = vmatprep.subr.bf16.mxu0 0
        %884 = vmatpush1.bf16.xpose.msra.mxu0 0
        %885 = vmatprep.subr.bf16.mxu0 0
        %886 = vmatpush1.bf16.xpose.msra.mxu0 0
        %887 = vmatprep.subr.bf16.mxu0 0
        %888 = vmatpush1.bf16.xpose.msra.mxu0 %v871
        %889 = vmatprep.subr.bf16.mxu0 0
        %890 = vmatpush2.bf16.xpose.msra.mxu0 0
        %891 = vmatprep.subr.bf16.mxu0 0
        %892 = vmatpush2.bf16.xpose.msra.mxu0 0
        %893 = vmatprep.subr.bf16.mxu0 0
        %894 = vmatpush2.bf16.xpose.msra.mxu0 0
        %895 = vmatprep.subr.bf16.mxu0 0
        %896 = vmatpush2.bf16.xpose.msra.mxu0 0
        %897 = vmatprep.subr.bf16.mxu0 0
        %898 = vmatpush2.bf16.xpose.msra.mxu0 0
        %899 = vmatprep.subr.bf16.mxu0 0
        %900 = vmatpush2.bf16.xpose.msra.mxu0 0
        %901 = vmatprep.subr.bf16.mxu0 0
        %902 = vmatpush2.bf16.xpose.msra.mxu0 0
        %903 = vmatprep.subr.bf16.mxu0 0
        %904 = vmatpush2.bf16.xpose.msra.mxu0 0
        %905 = vmatprep.mubr.bf16.mxu0 0
        %906 = vmatmul.mubr.bf16.gmra.mxu0 %v868
        %v907 = vpop.f32.mrf.mxu0
        %v908 = vadd.f32 0.0, %v907
        %v909 = vpop.f32.mrf.mxu0
        %v910 = vpop.f32.mrf.mxu0
        %v911 = vpop.f32.mrf.mxu0
        %912 = vdwg.mxu0
        %v913 = vsel %vm585, -1e+09, %v908
        %v914 = vsel %vm587, %v913, -inf
        %915 = vmax.xlane.f32.xlu0 %v914
        %v916 = vpop.xlane.xlu0 %915
        %v917 = vsub.f32 %v913, %v916
        %v918 = vmul.f32 %v917, 1.442695
        %v919 = vpow.pop %v918
        %v920 = vsel %vm587, %v919, 0.0
        %921 = vadd.xlane.f32.xlu0 %v920
        %v922 = vpop.xlane.xlu0 %921
        %v923 = vrcp.pop %v922
        %v924 = vmul.f32 %v919, %v923
        %v925 = vpack.c.bf16 %v924, %v924
        %926 = vrot.lane.b32.xlu0 %v528, 96
        %v927 = vpop.permute.xlu0 %926
        %v929 = vsel %vm587, %v925, 0
        %v932 = vsel %vm603, %v927, 0
        %934 = vmatprep.subr.bf16.mxu0 0
        %935 = vmatpush1.bf16.msra.mxu0 0
        %936 = vmatprep.subr.bf16.mxu0 0
        %937 = vmatpush1.bf16.msra.mxu0 0
        %938 = vmatprep.subr.bf16.mxu0 0
        %939 = vmatpush1.bf16.msra.mxu0 0
        %940 = vmatprep.subr.bf16.mxu0 0
        %941 = vmatpush1.bf16.msra.mxu0 0
        %942 = vmatprep.subr.bf16.mxu0 0
        %943 = vmatpush1.bf16.msra.mxu0 0
        %944 = vmatprep.subr.bf16.mxu0 0
        %945 = vmatpush1.bf16.msra.mxu0 0
        %946 = vmatprep.subr.bf16.mxu0 0
        %947 = vmatpush1.bf16.msra.mxu0 0
        %948 = vmatprep.subr.bf16.mxu0 0
        %949 = vmatpush1.bf16.msra.mxu0 %v932
        %950 = vmatprep.subr.bf16.mxu0 0
        %951 = vmatpush2.bf16.msra.mxu0 0
        %952 = vmatprep.subr.bf16.mxu0 0
        %953 = vmatpush2.bf16.msra.mxu0 0
        %954 = vmatprep.subr.bf16.mxu0 0
        %955 = vmatpush2.bf16.msra.mxu0 0
        %956 = vmatprep.subr.bf16.mxu0 0
        %957 = vmatpush2.bf16.msra.mxu0 0
        %958 = vmatprep.subr.bf16.mxu0 0
        %959 = vmatpush2.bf16.msra.mxu0 0
        %960 = vmatprep.subr.bf16.mxu0 0
        %961 = vmatpush2.bf16.msra.mxu0 0
        %962 = vmatprep.subr.bf16.mxu0 0
        %963 = vmatpush2.bf16.msra.mxu0 0
        %964 = vmatprep.subr.bf16.mxu0 0
        %965 = vmatpush2.bf16.msra.mxu0 0
        %966 = vmatprep.mubr.bf16.mxu0 0
        %967 = vmatmul.mubr.bf16.gmra.mxu0 %v929
        %v968 = vpop.f32.mrf.mxu0
        %v969 = vadd.f32 0.0, %v968
        %v970 = vpop.f32.mrf.mxu0
        %v971 = vpop.f32.mrf.mxu0
        %v972 = vpop.f32.mrf.mxu0
        %973 = vdwg.mxu0
        %v974 = vpack.c.bf16 %v969, %v969
        %v975 = vld [vmem:[%s4 + $0x10] sm:$0xf]
        %v976 = vld [vmem:[%s4 + $0x14] sm:$0xf]
        %v979 = vunpack.c.l.b16 %v975
        %v980 = vunpack.c.l.b16 %v976
        %v981 = vpack.c.b16 %v980, %v979
        %v984 = vsel %vm537, %v974, 0
        %986 = vmatprep.subr.bf16.mxu0 0
        %987 = vmatpush1.bf16.msra.mxu0 0
        %988 = vmatprep.subr.bf16.mxu0 0
        %989 = vmatpush1.bf16.msra.mxu0 0
        %990 = vmatprep.subr.bf16.mxu0 0
        %991 = vmatpush1.bf16.msra.mxu0 0
        %992 = vmatprep.subr.bf16.mxu0 0
        %993 = vmatpush1.bf16.msra.mxu0 0
        %994 = vmatprep.subr.bf16.mxu0 0
        %995 = vmatpush1.bf16.msra.mxu0 0
        %996 = vmatprep.subr.bf16.mxu0 0
        %997 = vmatpush1.bf16.msra.mxu0 0
        %998 = vmatprep.subr.bf16.mxu0 0
        %999 = vmatpush1.bf16.msra.mxu0 0
        %1000 = vmatprep.subr.bf16.mxu0 0
        %1001 = vmatpush1.bf16.msra.mxu0 %v981
        %1002 = vmatprep.subr.bf16.mxu0 0
        %1003 = vmatpush2.bf16.msra.mxu0 0
        %1004 = vmatprep.subr.bf16.mxu0 0
        %1005 = vmatpush2.bf16.msra.mxu0 0
        %1006 = vmatprep.subr.bf16.mxu0 0
        %1007 = vmatpush2.bf16.msra.mxu0 0
        %1008 = vmatprep.subr.bf16.mxu0 0
        %1009 = vmatpush2.bf16.msra.mxu0 0
        %1010 = vmatprep.subr.bf16.mxu0 0
        %1011 = vmatpush2.bf16.msra.mxu0 0
        %1012 = vmatprep.subr.bf16.mxu0 0
        %1013 = vmatpush2.bf16.msra.mxu0 0
        %1014 = vmatprep.subr.bf16.mxu0 0
        %1015 = vmatpush2.bf16.msra.mxu0 0
        %1016 = vmatprep.subr.bf16.mxu0 0
        %1017 = vmatpush2.bf16.msra.mxu0 0
        %1018 = vmatprep.mubr.bf16.mxu0 0
        %1019 = vmatmul.mubr.bf16.gmra.mxu0 %v984
        %v1020 = vpop.f32.mrf.mxu0
        %v1021 = vadd.f32 0.0, %v1020
        %v1022 = vpop.f32.mrf.mxu0
        %v1023 = vpop.f32.mrf.mxu0
        %v1024 = vpop.f32.mrf.mxu0
        %1025 = vdwg.mxu0
        %v1026 = vadd.f32 %v858, %v1021
        %1027 = vrot.lane.b32.xlu0 %v527, 80
        %v1028 = vpop.permute.xlu0 %1027
        %1029 = vrot.lane.b32.xlu0 %v527, 16
        %v1030 = vpop.permute.xlu0 %1029
        %v1032 = vsel %vm537, %v1028, 0
        %v1035 = vsel %vm537, %v1030, 0
        %1037 = vmatprep.subr.bf16.mxu0 0
        %1038 = vmatpush1.bf16.xpose.msra.mxu0 0
        %1039 = vmatprep.subr.bf16.mxu0 0
        %1040 = vmatpush1.bf16.xpose.msra.mxu0 0
        %1041 = vmatprep.subr.bf16.mxu0 0
        %1042 = vmatpush1.bf16.xpose.msra.mxu0 0
        %1043 = vmatprep.subr.bf16.mxu0 0
        %1044 = vmatpush1.bf16.xpose.msra.mxu0 0
        %1045 = vmatprep.subr.bf16.mxu0 0
        %1046 = vmatpush1.bf16.xpose.msra.mxu0 0
        %1047 = vmatprep.subr.bf16.mxu0 0
        %1048 = vmatpush1.bf16.xpose.msra.mxu0 0
        %1049 = vmatprep.subr.bf16.mxu0 0
        %1050 = vmatpush1.bf16.xpose.msra.mxu0 0
        %1051 = vmatprep.subr.bf16.mxu0 0
        %1052 = vmatpush1.bf16.xpose.msra.mxu0 %v1035
        %1053 = vmatprep.subr.bf16.mxu0 0
        %1054 = vmatpush2.bf16.xpose.msra.mxu0 0
        %1055 = vmatprep.subr.bf16.mxu0 0
        %1056 = vmatpush2.bf16.xpose.msra.mxu0 0
        %1057 = vmatprep.subr.bf16.mxu0 0
        %1058 = vmatpush2.bf16.xpose.msra.mxu0 0
        %1059 = vmatprep.subr.bf16.mxu0 0
        %1060 = vmatpush2.bf16.xpose.msra.mxu0 0
        %1061 = vmatprep.subr.bf16.mxu0 0
        %1062 = vmatpush2.bf16.xpose.msra.mxu0 0
        %1063 = vmatprep.subr.bf16.mxu0 0
        %1064 = vmatpush2.bf16.xpose.msra.mxu0 0
        %1065 = vmatprep.subr.bf16.mxu0 0
        %1066 = vmatpush2.bf16.xpose.msra.mxu0 0
        %1067 = vmatprep.subr.bf16.mxu0 0
        %1068 = vmatpush2.bf16.xpose.msra.mxu0 0
        %1069 = vmatprep.mubr.bf16.mxu0 0
        %1070 = vmatmul.mubr.bf16.gmra.mxu0 %v1032
        %v1071 = vpop.f32.mrf.mxu0
        %v1072 = vadd.f32 0.0, %v1071
        %v1073 = vpop.f32.mrf.mxu0
        %v1074 = vpop.f32.mrf.mxu0
        %v1075 = vpop.f32.mrf.mxu0
        %1076 = vdwg.mxu0
        %v1077 = vsel %vm585, -1e+09, %v1072
        %v1078 = vsel %vm587, %v1077, -inf
        %1079 = vmax.xlane.f32.xlu0 %v1078
        %v1080 = vpop.xlane.xlu0 %1079
        %v1081 = vsub.f32 %v1077, %v1080
        %v1082 = vmul.f32 %v1081, 1.442695
        %v1083 = vpow.pop %v1082
        %v1084 = vsel %vm587, %v1083, 0.0
        %1085 = vadd.xlane.f32.xlu0 %v1084
        %v1086 = vpop.xlane.xlu0 %1085
        %v1087 = vrcp.pop %v1086
        %v1088 = vmul.f32 %v1083, %v1087
        %v1089 = vpack.c.bf16 %v1088, %v1088
        %1090 = vrot.lane.b32.xlu0 %v528, 80
        %v1091 = vpop.permute.xlu0 %1090
        %v1093 = vsel %vm587, %v1089, 0
        %v1096 = vsel %vm603, %v1091, 0
        %1098 = vmatprep.subr.bf16.mxu0 0
        %1099 = vmatpush1.bf16.msra.mxu0 0
        %1100 = vmatprep.subr.bf16.mxu0 0
        %1101 = vmatpush1.bf16.msra.mxu0 0
        %1102 = vmatprep.subr.bf16.mxu0 0
        %1103 = vmatpush1.bf16.msra.mxu0 0
        %1104 = vmatprep.subr.bf16.mxu0 0
        %1105 = vmatpush1.bf16.msra.mxu0 0
        %1106 = vmatprep.subr.bf16.mxu0 0
        %1107 = vmatpush1.bf16.msra.mxu0 0
        %1108 = vmatprep.subr.bf16.mxu0 0
        %1109 = vmatpush1.bf16.msra.mxu0 0
        %1110 = vmatprep.subr.bf16.mxu0 0
        %1111 = vmatpush1.bf16.msra.mxu0 0
        %1112 = vmatprep.subr.bf16.mxu0 0
        %1113 = vmatpush1.bf16.msra.mxu0 %v1096
        %1114 = vmatprep.subr.bf16.mxu0 0
        %1115 = vmatpush2.bf16.msra.mxu0 0
        %1116 = vmatprep.subr.bf16.mxu0 0
        %1117 = vmatpush2.bf16.msra.mxu0 0
        %1118 = vmatprep.subr.bf16.mxu0 0
        %1119 = vmatpush2.bf16.msra.mxu0 0
        %1120 = vmatprep.subr.bf16.mxu0 0
        %1121 = vmatpush2.bf16.msra.mxu0 0
        %1122 = vmatprep.subr.bf16.mxu0 0
        %1123 = vmatpush2.bf16.msra.mxu0 0
        %1124 = vmatprep.subr.bf16.mxu0 0
        %1125 = vmatpush2.bf16.msra.mxu0 0
        %1126 = vmatprep.subr.bf16.mxu0 0
        %1127 = vmatpush2.bf16.msra.mxu0 0
        %1128 = vmatprep.subr.bf16.mxu0 0
        %1129 = vmatpush2.bf16.msra.mxu0 0
        %1130 = vmatprep.mubr.bf16.mxu0 0
        %1131 = vmatmul.mubr.bf16.gmra.mxu0 %v1093
        %v1132 = vpop.f32.mrf.mxu0
        %v1133 = vadd.f32 0.0, %v1132
        %v1134 = vpop.f32.mrf.mxu0
        %v1135 = vpop.f32.mrf.mxu0
        %v1136 = vpop.f32.mrf.mxu0
        %1137 = vdwg.mxu0
        %v1138 = vpack.c.bf16 %v1133, %v1133
        %v1139 = vld [vmem:[%s4 + $0x18] sm:$0xf]
        %v1140 = vld [vmem:[%s4 + $0x1c] sm:$0xf]
        %v1143 = vunpack.c.l.b16 %v1139
        %v1144 = vunpack.c.l.b16 %v1140
        %v1145 = vpack.c.b16 %v1144, %v1143
        %v1148 = vsel %vm537, %v1138, 0
        %1150 = vmatprep.subr.bf16.mxu0 0
        %1151 = vmatpush1.bf16.msra.mxu0 0
        %1152 = vmatprep.subr.bf16.mxu0 0
        %1153 = vmatpush1.bf16.msra.mxu0 0
        %1154 = vmatprep.subr.bf16.mxu0 0
        %1155 = vmatpush1.bf16.msra.mxu0 0
        %1156 = vmatprep.subr.bf16.mxu0 0
        %1157 = vmatpush1.bf16.msra.mxu0 0
        %1158 = vmatprep.subr.bf16.mxu0 0
        %1159 = vmatpush1.bf16.msra.mxu0 0
        %1160 = vmatprep.subr.bf16.mxu0 0
        %1161 = vmatpush1.bf16.msra.mxu0 0
        %1162 = vmatprep.subr.bf16.mxu0 0
        %1163 = vmatpush1.bf16.msra.mxu0 0
        %1164 = vmatprep.subr.bf16.mxu0 0
        %1165 = vmatpush1.bf16.msra.mxu0 %v1145
        %1166 = vmatprep.subr.bf16.mxu0 0
        %1167 = vmatpush2.bf16.msra.mxu0 0
        %1168 = vmatprep.subr.bf16.mxu0 0
        %1169 = vmatpush2.bf16.msra.mxu0 0
        %1170 = vmatprep.subr.bf16.mxu0 0
        %1171 = vmatpush2.bf16.msra.mxu0 0
        %1172 = vmatprep.subr.bf16.mxu0 0
        %1173 = vmatpush2.bf16.msra.mxu0 0
        %1174 = vmatprep.subr.bf16.mxu0 0
        %1175 = vmatpush2.bf16.msra.mxu0 0
        %1176 = vmatprep.subr.bf16.mxu0 0
        %1177 = vmatpush2.bf16.msra.mxu0 0
        %1178 = vmatprep.subr.bf16.mxu0 0
        %1179 = vmatpush2.bf16.msra.mxu0 0
        %1180 = vmatprep.subr.bf16.mxu0 0
        %1181 = vmatpush2.bf16.msra.mxu0 0
        %1182 = vmatprep.mubr.bf16.mxu0 0
        %1183 = vmatmul.mubr.bf16.gmra.mxu0 %v1148
        %v1184 = vpop.f32.mrf.mxu0
        %v1185 = vadd.f32 0.0, %v1184
        %v1186 = vpop.f32.mrf.mxu0
        %v1187 = vpop.f32.mrf.mxu0
        %v1188 = vpop.f32.mrf.mxu0
        %1189 = vdwg.mxu0
        %v1190 = vadd.f32 %v1026, %v1185
        %v1191 = vld [vmem:[%s5] sm:$0x1]
        %v1193 = vlaneseq
        %v1194 = vshrl.u32 %v1193, 7
        %v1195 = vsub.s32 0, %v1194
        %v1196 = vrot.slane %v1191, %v1195
        %v1198 = vadd.f32 %v1190, %v1196
        %v1199 = vld [vmem:[%s6] sm:$0x1]
        %v1200 = vld [vmem:[%s7] sm:$0x1]
        %v1201 = vsel %vm482, %v1198, 0.0
        %1202 = vadd.xlane.f32.xlu0 %v1201
        %v1203 = vpop.xlane.xlu0 %1202
        %v1204 = vrcp.pop 32.0
        %v1205 = vmul.f32 %v1203, %v1204
        %v1206 = vsub.f32 %v1198, %v1205
        %v1207 = vmul.f32 %v1206, %v1206
        %v1208 = vsel %vm482, %v1207, 0.0
        %1209 = vadd.xlane.f32.xlu0 %v1208
        %v1210 = vpop.xlane.xlu0 %1209
        %v1211 = vmul.f32 %v1210, %v1204
        %v1212 = vadd.f32 %v1211, 1e-05
        %v1213 = vrsqrt.pop %v1212
        %v1214 = vmul.f32 %v1206, %v1213
        %v1216 = vlaneseq
        %v1217 = vshrl.u32 %v1216, 7
        %v1218 = vsub.s32 0, %v1217
        %v1219 = vrot.slane %v1199, %v1218
        %v1221 = vmul.f32 %v1214, %v1219
        %v1223 = vlaneseq
        %v1224 = vshrl.u32 %v1223, 7
        %v1225 = vsub.s32 0, %v1224
        %v1226 = vrot.slane %v1200, %v1225
        %v1228 = vadd.f32 %v1221, %v1226
        %v1229 = vpack.c.bf16 %v1228, %v1228
        %v1230 = vld [vmem:[%s8] sm:$0xf]
        %v1231 = vld [vmem:[%s8 + $0x4] sm:$0xf]
        %v1232 = vld [vmem:[%s8 + $0x8] sm:$0xf]
        %v1233 = vld [vmem:[%s8 + $0xc] sm:$0xf]
        %v1234 = vld [vmem:[%s9] sm:$0x1]
        %v1236 = vlaneseq
        %v1237 = vshrl.u32 %v1236, 7
        %v1238 = vsub.s32 0, %v1237
        %v1239 = vrot.slane %v1234, %v1238
        %v1245 = vunpack.c.l.b16 %v1230
        %v1246 = vunpack.c.l.b16 %v1231
        %v1247 = vunpack.c.l.b16 %v1232
        %v1248 = vunpack.c.l.b16 %v1233
        %v1249 = vpack.c.b16 %v1246, %v1245
        %v1250 = vpack.c.b16 %v1248, %v1247
        %v1254 = vsel %vm482, %v1229, 0
        %1256 = vmatprep.subr.bf16.mxu0 0
        %1257 = vmatpush1.bf16.msra.mxu0 0
        %1258 = vmatprep.subr.bf16.mxu0 0
        %1259 = vmatpush1.bf16.msra.mxu0 0
        %1260 = vmatprep.subr.bf16.mxu0 0
        %1261 = vmatpush1.bf16.msra.mxu0 0
        %1262 = vmatprep.subr.bf16.mxu0 0
        %1263 = vmatpush1.bf16.msra.mxu0 0
        %1264 = vmatprep.subr.bf16.mxu0 0
        %1265 = vmatpush1.bf16.msra.mxu0 0
        %1266 = vmatprep.subr.bf16.mxu0 0
        %1267 = vmatpush1.bf16.msra.mxu0 0
        %1268 = vmatprep.subr.bf16.mxu0 0
        %1269 = vmatpush1.bf16.msra.mxu0 %v1250
        %1270 = vmatprep.subr.bf16.mxu0 0
        %1271 = vmatpush1.bf16.msra.mxu0 %v1249
        %1272 = vmatprep.subr.bf16.mxu0 0
        %1273 = vmatpush2.bf16.msra.mxu0 0
        %1274 = vmatprep.subr.bf16.mxu0 0
        %1275 = vmatpush2.bf16.msra.mxu0 0
        %1276 = vmatprep.subr.bf16.mxu0 0
        %1277 = vmatpush2.bf16.msra.mxu0 0
        %1278 = vmatprep.subr.bf16.mxu0 0
        %1279 = vmatpush2.bf16.msra.mxu0 0
        %1280 = vmatprep.subr.bf16.mxu0 0
        %1281 = vmatpush2.bf16.msra.mxu0 0
        %1282 = vmatprep.subr.bf16.mxu0 0
        %1283 = vmatpush2.bf16.msra.mxu0 0
        %1284 = vmatprep.subr.bf16.mxu0 0
        %1285 = vmatpush2.bf16.msra.mxu0 0
        %1286 = vmatprep.subr.bf16.mxu0 0
        %1287 = vmatpush2.bf16.msra.mxu0 0
        %1288 = vmatprep.mubr.bf16.mxu0 0
        %1289 = vmatmul.mubr.bf16.gmra.mxu0 %v1254
        %v1290 = vpop.f32.mrf.mxu0
        %v1291 = vadd.f32 %v1239, %v1290
        %v1292 = vpop.f32.mrf.mxu0
        %v1293 = vpop.f32.mrf.mxu0
        %v1294 = vpop.f32.mrf.mxu0
        %1295 = vdwg.mxu0
        %v1296 = vmul.f32 %v1291, 0.5
        %v1297 = vmul.f32 %v1291, 0.044715
        %v1298 = vmul.f32 %v1297, %v1291
        %v1299 = vmul.f32 %v1298, %v1291
        %v1300 = vadd.f32 %v1291, %v1299
        %v1301 = vmul.f32 %v1300, 0.7978846
        %v1302 = vtanh.pop %v1301
        %v1303 = vadd.f32 %v1302, 1.0
        %v1304 = vmul.f32 %v1296, %v1303
        %v1305 = vpack.c.bf16 %v1304, %v1304
        %v1306 = vld [vmem:[%s10] sm:$0xf]
        %v1307 = vld [vmem:[%s10 + $0x4] sm:$0xf]
        %v1308 = vld [vmem:[%s11] sm:$0x1]
        %v1310 = vlaneseq
        %v1311 = vshrl.u32 %v1310, 7
        %v1312 = vsub.s32 0, %v1311
        %v1313 = vrot.slane %v1308, %v1312
        %v1317 = vunpack.c.l.b16 %v1306
        %v1318 = vunpack.c.l.b16 %v1307
        %v1319 = vpack.c.b16 %v1318, %v1317
        %v1322 = vsel %vm537, %v1305, 0
        %1324 = vmatprep.subr.bf16.mxu0 0
        %1325 = vmatpush1.bf16.msra.mxu0 0
        %1326 = vmatprep.subr.bf16.mxu0 0
        %1327 = vmatpush1.bf16.msra.mxu0 0
        %1328 = vmatprep.subr.bf16.mxu0 0
        %1329 = vmatpush1.bf16.msra.mxu0 0
        %1330 = vmatprep.subr.bf16.mxu0 0
        %1331 = vmatpush1.bf16.msra.mxu0 0
        %1332 = vmatprep.subr.bf16.mxu0 0
        %1333 = vmatpush1.bf16.msra.mxu0 0
        %1334 = vmatprep.subr.bf16.mxu0 0
        %1335 = vmatpush1.bf16.msra.mxu0 0
        %1336 = vmatprep.subr.bf16.mxu0 0
        %1337 = vmatpush1.bf16.msra.mxu0 0
        %1338 = vmatprep.subr.bf16.mxu0 0
        %1339 = vmatpush1.bf16.msra.mxu0 %v1319
        %1340 = vmatprep.subr.bf16.mxu0 0
        %1341 = vmatpush2.bf16.msra.mxu0 0
        %1342 = vmatprep.subr.bf16.mxu0 0
        %1343 = vmatpush2.bf16.msra.mxu0 0
        %1344 = vmatprep.subr.bf16.mxu0 0
        %1345 = vmatpush2.bf16.msra.mxu0 0
        %1346 = vmatprep.subr.bf16.mxu0 0
        %1347 = vmatpush2.bf16.msra.mxu0 0
        %1348 = vmatprep.subr.bf16.mxu0 0
        %1349 = vmatpush2.bf16.msra.mxu0 0
        %1350 = vmatprep.subr.bf16.mxu0 0
        %1351 = vmatpush2.bf16.msra.mxu0 0
        %1352 = vmatprep.subr.bf16.mxu0 0
        %1353 = vmatpush2.bf16.msra.mxu0 0
        %1354 = vmatprep.subr.bf16.mxu0 0
        %1355 = vmatpush2.bf16.msra.mxu0 0
        %1356 = vmatprep.mubr.bf16.mxu0 0
        %1357 = vmatmul.mubr.bf16.gmra.mxu0 %v1322
        %v1358 = vpop.f32.mrf.mxu0
        %v1359 = vadd.f32 %v1313, %v1358
        %v1360 = vpop.f32.mrf.mxu0
        %v1361 = vpop.f32.mrf.mxu0
        %v1362 = vpop.f32.mrf.mxu0
        %1363 = vdwg.mxu0
        %v1364 = vld [vmem:[%s12] sm:$0x1]
        %v1365 = vld [vmem:[%s13] sm:$0x1]
        %v1366 = vsel %vm482, %v1359, 0.0
        %1367 = vadd.xlane.f32.xlu0 %v1366
        %v1368 = vpop.xlane.xlu0 %1367
        %v1369 = vmul.f32 %v1368, %v1204
        %v1370 = vsub.f32 %v1359, %v1369
        %v1371 = vmul.f32 %v1370, %v1370
        %v1372 = vsel %vm482, %v1371, 0.0
        %1373 = vadd.xlane.f32.xlu0 %v1372
        %v1374 = vpop.xlane.xlu0 %1373
        %v1375 = vmul.f32 %v1374, %v1204
        %v1376 = vadd.f32 %v1375, 1e-05
        %v1377 = vrsqrt.pop %v1376
        %v1378 = vmul.f32 %v1370, %v1377
        %v1380 = vlaneseq
        %v1381 = vshrl.u32 %v1380, 7
        %v1382 = vsub.s32 0, %v1381
        %v1383 = vrot.slane %v1364, %v1382
        %v1385 = vmul.f32 %v1378, %v1383
        %v1387 = vlaneseq
        %v1388 = vshrl.u32 %v1387, 7
        %v1389 = vsub.s32 0, %v1388
        %v1390 = vrot.slane %v1365, %v1389
        %v1392 = vadd.f32 %v1385, %v1390
        %1393 = vst.msk [vmem:[%s438] sm:$0xff] %vm482, %v1392
        %s1394 = sand.u32 %s320, 1
        %s1395 = scalar_lea.sflag [#allocation5], %s1394
        %s1396 = sand.u32 %s320, 1
        %s1397 = smul.addr %s1396, 8
        %s1398 = scalar_lea.vmem [#allocation4], %s1397
        // Predicated region
        $region73: #{tpu_custom_call.1} parent=71 // pred_check
          %p1399 = pneg %p330
        $region74: #{tpu_custom_call.1} parent=71 // pred_check_branch
          %1401 = sbr.rel (%p1399) target = $region76
        $region75: #{tpu_custom_call.1} parent=71 // pred_region
          %s1403 = ssub.s32 128, 128
          %1404 = vsyncadd %s1395, %s1403
          %s1405 = smul.addr %s34, 128
          %s1406 = scalar_lea.hbm %s14, %s1405
          %s1408 = sshll.u32 %s1398, 4
          %s1409 = int_to_ptr.vmem [resolvable:$true] %s1408
          %1411 = dma.vmem_to_hbm [thread:$0]  %s1409, 128, %s1406, %s1395
        $region76: #{tpu_custom_call.1} parent=71 // pred_fallthru
          _
      $region72: #{tpu_custom_call.1} parent=5 // pred_fallthru
        _
      %p1412 = scmp.le.s32.totalorder 2, %s29
      // Predicated region
      $region77: #{tpu_custom_call.1} parent=5 // pred_check
        %p1413 = pneg %p1412
      $region78: #{tpu_custom_call.1} parent=5 // pred_check_branch
        %1415 = sbr.rel (%p1413) target = $region80
      $region79: #{tpu_custom_call.1} parent=5 // pred_region
        %s1416 = ssub.s32 %s29, 2
        // Predicated region
        $region81: #{tpu_custom_call.1} parent=79 // pred_check
          %p1417 = pneg %p336
        $region82: #{tpu_custom_call.1} parent=79 // pred_check_branch
          %1419 = sbr.rel (%p1417) target = $region84
        $region83: #{tpu_custom_call.1} parent=79 // pred_region
          %s1420 = sand.u32 %s321, 1
          %s1421 = scalar_lea.sflag [#allocation5], %s1420
          %s1422 = sand.u32 %s321, 1
          %s1423 = smul.addr %s1422, 8
          %s1424 = scalar_lea.vmem [#allocation4], %s1423
          %1425 = dma.done %s1421, 128
        $region84: #{tpu_custom_call.1} parent=79 // pred_fallthru
          _
      $region80: #{tpu_custom_call.1} parent=5 // pred_fallthru
        _
    $region6: #{tpu_custom_call.1} parent=1 // loop_footer
      %s33 = sadd.s32 1, %s29
    $region7: #{tpu_custom_call.1} parent=1 // loop_footer_branch
      %28 = sbr.rel target = $region3
    $region8: #{tpu_custom_call.1} parent=1 // loop_exit
      _
    %1426 = vsyncpa [#allocation5], 1
    %s1427 = scalar_lea.sflag [#allocation5], 1
    %1428 = vsyncpa %s1427, 1

</llo_original>
